<compile_context>
chip_gen: v5e
topology: v5e:2x2
jax: 0.10.0
libtpu: 0.0.40
codegen_flags: <defaults>
</compile_context>

<pallas_src>
import jax
import jax.numpy as jnp
from jax import lax
from jax.experimental import pallas as pl
from jax.experimental.pallas import tpu as pltpu

EXPANSION = 4
BN_EPS = 1e-5


def bottleneck_kernel(x_ref, w1_ref, w2_ref, w3_ref, b1_ref, b2_ref, b3_ref,
                      o_ref, h1_pad_ref):
    # x_ref:      (1, H, W, Cin)  bf16 -- full image, resident across row tiles
    # w1_ref:     (Cin, P)        bf16 (BN1 scale folded in)
    # w2_ref:     (9*P, P)        bf16 (BN2 scale folded in, im2col layout)
    # w3_ref:     (P, Cout)       bf16 (BN3 scale folded in)
    # b*_ref:     (1, P)/(1,Cout) f32  folded BN biases
    # o_ref:      (1, TH, W, Cout) f32 -- one row tile
    # h1_pad_ref: (H+2, W+2, P)   bf16 persistent scratch (zero border)
    r = pl.program_id(1)
    H, W, Cin = x_ref.shape[1], x_ref.shape[2], x_ref.shape[3]
    TH = o_ref.shape[1]
    P = w1_ref.shape[1]
    Cout = w3_ref.shape[1]

    # ---- conv1 (1x1) + folded BN1 + ReLU over the whole (resident) image ----
    # Computed once per batch image (first row tile) into a zero-padded VMEM
    # scratch so conv2 never pads / re-materializes per step.
    @pl.when(r == 0)
    def _():
        x2d = x_ref[0].reshape(H * W, Cin)                       # bf16
        h1 = jnp.dot(x2d, w1_ref[...], preferred_element_type=jnp.float32)
        h1 = jnp.maximum(h1 + b1_ref[...], 0.0)                  # f32 epilogue
        h1_bf = h1.astype(jnp.bfloat16).reshape(H, W, P)
        h1_pad_ref[...] = jnp.pad(h1_bf, ((1, 1), (1, 1), (0, 0)))

    # ---- conv2 (3x3, stride 1, pad 1) + folded BN2 + ReLU for this row tile ----
    # Single im2col matmul: patches (TH*W, 9*P) @ w2 (9*P, P) keeps the MXU full
    # (K = 9*P) instead of 9 under-filled K=P matmuls.
    row0 = pl.multiple_of(r * TH, TH)       # top output row of this tile
    cols = []
    for ky in range(3):
        slab = h1_pad_ref[pl.ds(row0 + ky, TH), :, :]            # (TH, W+2, P) bf16
        for kx in range(3):
            cols.append(slab[:, kx:kx + W, :].reshape(TH * W, P))
    patches = jnp.concatenate(cols, axis=-1)                     # (TH*W, 9*P) bf16
    h2 = jnp.dot(patches, w2_ref[...], preferred_element_type=jnp.float32)
    h2 = jnp.maximum(h2 + b2_ref[...], 0.0)                      # (TH*W, P) f32

    # ---- conv3 (1x1) + folded BN3 + residual + ReLU ----
    h3 = jnp.dot(h2.astype(jnp.bfloat16), w3_ref[...],
                 preferred_element_type=jnp.float32)             # (TH*W, Cout)
    res = x_ref[0, pl.ds(row0, TH), :, :].astype(jnp.float32).reshape(TH * W, Cout)
    out = jnp.maximum(h3 + b3_ref[...] + res, 0.0)
    o_ref[0] = out.reshape(TH, W, Cout).astype(o_ref.dtype)


def bottleneck_forward(x, w1, w2, w3, s1, b1, s2, b2, s3, b3,
                       *, row_tile=8, vmem_limit_bytes=32 * 1024 * 1024):
    # x: (N, H, W, Cin) float32, NHWC
    N, H, W, Cin = x.shape
    P = w1.shape[1]
    Cout = w3.shape[1]
    assert Cout == Cin, "residual add requires inplanes == planes * expansion"

    TH = row_tile if (row_tile is not None and H % row_tile == 0) else H
    n_rt = H // TH

    # Host-side one-time transforms:
    #  * fold BN scale into conv weight output channels,
    #  * reshape w2 to (9*P, P) matching the in-kernel im2col patch ordering,
    #  * cast MXU operands (input + weights) to bf16.
    w1_f = (w1 * s1[0][None, :]).astype(jnp.bfloat16)                         # (Cin, P)
    w2_f = (w2 * s2[0][None, None, None, :]).reshape(9 * P, P).astype(jnp.bfloat16)
    w3_f = (w3 * s3[0][None, :]).astype(jnp.bfloat16)                         # (P, Cout)
    xb = x.astype(jnp.bfloat16)
    b1f = b1.astype(jnp.float32)
    b2f = b2.astype(jnp.float32)
    b3f = b3.astype(jnp.float32)

    full = lambda shape: pl.BlockSpec(shape, lambda b, r: (0,) * len(shape))

    return pl.pallas_call(
        bottleneck_kernel,
        out_shape=jax.ShapeDtypeStruct((N, H, W, Cout), jnp.float32),
        grid_spec=pltpu.PrefetchScalarGridSpec(
            num_scalar_prefetch=0,
            grid=(N, n_rt),
            in_specs=[
                # whole image per batch; Pallas skips the re-fetch while the
                # block index (b) is unchanged across the row-tile axis.
                pl.BlockSpec((1, H, W, Cin), lambda b, r: (b, 0, 0, 0)),
                full((Cin, P)),          # w1 (scale-folded, bf16)
                full((9 * P, P)),        # w2 (scale-folded, im2col layout, bf16)
                full((P, Cout)),         # w3 (scale-folded, bf16)
                full((1, P)),            # bn1 bias
                full((1, P)),            # bn2 bias
                full((1, Cout)),         # bn3 bias
            ],
            out_specs=pl.BlockSpec((1, TH, W, Cout), lambda b, r: (b, r, 0, 0)),
            scratch_shapes=[pltpu.VMEM((H + 2, W + 2, P), jnp.bfloat16)],
        ),
        compiler_params=pltpu.CompilerParams(
            # batch axis parallel (megacore), row-tile axis sequential because
            # the h1 scratch is filled at r == 0 and reused by later tiles.
            dimension_semantics=("parallel", "arbitrary"),
            vmem_limit_bytes=vmem_limit_bytes),
    )(xb, w1_f, w2_f, w3_f, b1f, b2f, b3f)


def reference_forward(x, w1, w2, w3, s1, b1, s2, b2, s3, b3):
    # Matched-precision pure-JAX reference (same BN folding + bf16 matmul
    # operands, f32 accumulation) so the comparison isolates kernel bugs from
    # the intentional bf16 numerics change.
    dn = ("NHWC", "HWIO", "NHWC")
    w1_f = (w1 * s1[0][None, :]).astype(jnp.bfloat16)
    w2_f = (w2 * s2[0][None, None, None, :]).astype(jnp.bfloat16)
    w3_f = (w3 * s3[0][None, :]).astype(jnp.bfloat16)
    xb = x.astype(jnp.bfloat16)

    h = lax.conv_general_dilated(xb, w1_f[None, None], (1, 1), "VALID",
                                 dimension_numbers=dn,
                                 preferred_element_type=jnp.float32)
    h = jnp.maximum(h + b1[0], 0.0)
    h = lax.conv_general_dilated(h.astype(jnp.bfloat16), w2_f, (1, 1), "SAME",
                                 dimension_numbers=dn,
                                 preferred_element_type=jnp.float32)
    h = jnp.maximum(h + b2[0], 0.0)
    h = lax.conv_general_dilated(h.astype(jnp.bfloat16), w3_f[None, None], (1, 1),
                                 "VALID", dimension_numbers=dn,
                                 preferred_element_type=jnp.float32)
    h = h + b3[0] + xb.astype(jnp.float32)
    return jnp.maximum(h, 0.0)


def fold_bn(gamma, beta, mean, var):
    scale = gamma / jnp.sqrt(var + BN_EPS)
    bias = beta - mean * scale
    return scale[None, :], bias[None, :]


if __name__ == "__main__":
    # Small demo shapes consistent with the module: inplanes = planes * expansion.
    # planes=32 -> Cin = Cout = 128, so the residual path and output stores are
    # lane-dense (multiple of 128) and conv2's im2col K = 9*32 = 288 >= 256.
    N, H, W = 2, 16, 16
    planes = 32
    inplanes = planes * EXPANSION          # 128 -> residual add valid (downsample=None)

    key = jax.random.PRNGKey(0)
    keys = jax.random.split(key, 8)

    x = jax.random.normal(keys[0], (N, H, W, inplanes), jnp.float32)

    # conv weights (deterministic synthetic init)
    w1 = jax.random.normal(keys[1], (inplanes, planes), jnp.float32) * 0.1
    w2 = jax.random.normal(keys[2], (3, 3, planes, planes), jnp.float32) * 0.1
    w3 = jax.random.normal(keys[3], (planes, planes * EXPANSION), jnp.float32) * 0.1

    # BatchNorm params (gamma, beta, running_mean, running_var) folded to scale/bias.
    def bn_params(k, c):
        k1, k2, k3, k4 = jax.random.split(k, 4)
        gamma = 1.0 + 0.1 * jax.random.normal(k1, (c,), jnp.float32)
        beta = 0.1 * jax.random.normal(k2, (c,), jnp.float32)
        mean = 0.1 * jax.random.normal(k3, (c,), jnp.float32)
        var = jnp.abs(1.0 + 0.1 * jax.random.normal(k4, (c,), jnp.float32))
        return fold_bn(gamma, beta, mean, var)

    s1, b1 = bn_params(keys[4], planes)
    s2, b2 = bn_params(keys[5], planes)
    s3, b3 = bn_params(keys[6], planes * EXPANSION)

    out = bottleneck_forward(x, w1, w2, w3, s1, b1, s2, b2, s3, b3)
    out = jax.block_until_ready(out)

    ref = reference_forward(x, w1, w2, w3, s1, b1, s2, b2, s3, b3)
    assert out.shape == (N, H, W, inplanes)
    max_err = jnp.max(jnp.abs(out - ref))
    assert jnp.allclose(out, ref, atol=1e-2, rtol=1e-2), \
        f"max abs err = {max_err}"

    print("KERNEL_OK")
</pallas_src>

<mosaic_0001>
module attributes {stable_mosaic.version = 11 : i64} {
  func.func @bottleneck_kernel(%arg0: i32, %arg1: i32, %arg2: memref<1x16x16x128xbf16, #tpu.memory_space<vmem>>, %arg3: memref<128x32xbf16, #tpu.memory_space<vmem>>, %arg4: memref<288x32xbf16, #tpu.memory_space<vmem>>, %arg5: memref<32x128xbf16, #tpu.memory_space<vmem>>, %arg6: memref<1x32xf32, #tpu.memory_space<vmem>>, %arg7: memref<1x32xf32, #tpu.memory_space<vmem>>, %arg8: memref<1x128xf32, #tpu.memory_space<vmem>>, %arg9: memref<1x8x16x128xf32, #tpu.memory_space<vmem>>, %arg10: memref<18x18x32xbf16, #tpu.memory_space<vmem>>) attributes {dimension_semantics = [#tpu.dimension_semantics<parallel>, #tpu.dimension_semantics<arbitrary>], iteration_bounds = array<i64: 2, 2>, scalar_prefetch = 0 : i64, scratch_operands = 1 : i64, tpu.core_type = #tpu.core_type<tc>, window_params = [{transform_indices = @transform_0, window_bounds = array<i64: 1, 16, 16, 128>}, {pipeline_mode = #tpu.pipeline_mode<synchronous>, transform_indices = @transform_1, window_bounds = array<i64: 128, 32>}, {pipeline_mode = #tpu.pipeline_mode<synchronous>, transform_indices = @transform_2, window_bounds = array<i64: 288, 32>}, {pipeline_mode = #tpu.pipeline_mode<synchronous>, transform_indices = @transform_3, window_bounds = array<i64: 32, 128>}, {pipeline_mode = #tpu.pipeline_mode<synchronous>, transform_indices = @transform_4, window_bounds = array<i64: 1, 32>}, {pipeline_mode = #tpu.pipeline_mode<synchronous>, transform_indices = @transform_5, window_bounds = array<i64: 1, 32>}, {pipeline_mode = #tpu.pipeline_mode<synchronous>, transform_indices = @transform_6, window_bounds = array<i64: 1, 128>}, {transform_indices = @transform_7, window_bounds = array<i64: 1, 8, 16, 128>}]} {
    %c0_i32 = arith.constant 0 : i32
    %0 = arith.cmpi eq, %arg1, %c0_i32 : i32
    %1 = arith.extui %0 : i1 to i32
    %c0_i32_0 = arith.constant 0 : i32
    %2 = arith.cmpi ne, %1, %c0_i32_0 : i32
    scf.if %2 {
      %c0_25 = arith.constant 0 : index
      %c0_26 = arith.constant 0 : index
      %c0_27 = arith.constant 0 : index
      %c0_28 = arith.constant 0 : index
      %58 = vector.load %arg2[%c0_25, %c0_26, %c0_27, %c0_28] : memref<1x16x16x128xbf16, #tpu.memory_space<vmem>>, vector<1x16x16x128xbf16>
      %59 = vector.shape_cast %58 : vector<1x16x16x128xbf16> to vector<16x16x128xbf16>
      %60 = vector.shape_cast %59 : vector<16x16x128xbf16> to vector<256x128xbf16>
      %c0_29 = arith.constant 0 : index
      %c0_30 = arith.constant 0 : index
      %61 = vector.load %arg3[%c0_29, %c0_30] : memref<128x32xbf16, #tpu.memory_space<vmem>>, vector<128x32xbf16>
      %cst_31 = arith.constant dense<0.000000e+00> : vector<256x32xf32>
      %62 = tpu.matmul %60, %61, %cst_31 {dimension_numbers = #tpu.dot_dimension_numbers<[1], [0], [0], [1], [0, 0, 1, 1], [], []>} : vector<256x128xbf16>, vector<128x32xbf16>, vector<256x32xf32> -> vector<256x32xf32>
      %c0_32 = arith.constant 0 : index
      %c0_33 = arith.constant 0 : index
      %63 = vector.load %arg6[%c0_32, %c0_33] : memref<1x32xf32, #tpu.memory_space<vmem>>, vector<1x32xf32>
      %64 = vector.broadcast %63 : vector<1x32xf32> to vector<256x32xf32>
      %65 = arith.addf %62, %64 : vector<256x32xf32>
      %cst_34 = arith.constant 0.000000e+00 : f32
      %66 = vector.broadcast %cst_34 : f32 to vector<256x32xf32>
      %67 = arith.maximumf %65, %66 : vector<256x32xf32>
      %68 = arith.truncf %67 : vector<256x32xf32> to vector<256x32xbf16>
      %69 = vector.shape_cast %68 : vector<256x32xbf16> to vector<16x16x32xbf16>
      %c0_i32_35 = arith.constant 0 : i32
      %70 = arith.sitofp %c0_i32_35 : i32 to bf16
      %71 = vector.broadcast %70 : bf16 to vector<1x16x32xbf16>
      %72 = tpu.concatenate %71, %69 in 0 : vector<1x16x32xbf16>, vector<16x16x32xbf16> -> vector<17x16x32xbf16>
      %73 = vector.broadcast %70 : bf16 to vector<1x16x32xbf16>
      %74 = tpu.concatenate %72, %73 in 0 : vector<17x16x32xbf16>, vector<1x16x32xbf16> -> vector<18x16x32xbf16>
      %75 = vector.broadcast %70 : bf16 to vector<18x1x32xbf16>
      %76 = tpu.concatenate %75, %74 in 1 : vector<18x1x32xbf16>, vector<18x16x32xbf16> -> vector<18x17x32xbf16>
      %77 = vector.broadcast %70 : bf16 to vector<18x1x32xbf16>
      %78 = tpu.concatenate %76, %77 in 1 : vector<18x17x32xbf16>, vector<18x1x32xbf16> -> vector<18x18x32xbf16>
      %c0_36 = arith.constant 0 : index
      %c0_37 = arith.constant 0 : index
      %c0_38 = arith.constant 0 : index
      %79 = vector.load %arg10[%c0_36, %c0_37, %c0_38] : memref<18x18x32xbf16, #tpu.memory_space<vmem>>, vector<18x18x32xbf16>
      tpu.vector_store %arg10[%c0_36, %c0_37, %c0_38], %78 {strides = array<i32>} : memref<18x18x32xbf16, #tpu.memory_space<vmem>>, vector<18x18x32xbf16>,
    } else {
    }
    %c8_i32 = arith.constant 8 : i32
    %3 = arith.muli %arg1, %c8_i32 : i32
    %4 = tpu.assume_multiple %3, 8 : i32
    %c0_i32_1 = arith.constant 0 : i32
    %5 = arith.addi %4, %c0_i32_1 : i32
    %6 = arith.index_cast %5 : i32 to index
    %c0 = arith.constant 0 : index
    %c0_2 = arith.constant 0 : index
    %7 = vector.load %arg10[%6, %c0, %c0_2] : memref<18x18x32xbf16, #tpu.memory_space<vmem>>, vector<8x18x32xbf16>
    %8 = vector.extract_strided_slice %7 {offsets = [0, 0, 0], sizes = [8, 16, 32], strides = [1, 1, 1]} : vector<8x18x32xbf16> to vector<8x16x32xbf16>
    %9 = vector.shape_cast %8 : vector<8x16x32xbf16> to vector<128x32xbf16>
    %10 = vector.extract_strided_slice %7 {offsets = [0, 1, 0], sizes = [8, 16, 32], strides = [1, 1, 1]} : vector<8x18x32xbf16> to vector<8x16x32xbf16>
    %11 = vector.shape_cast %10 : vector<8x16x32xbf16> to vector<128x32xbf16>
    %12 = vector.extract_strided_slice %7 {offsets = [0, 2, 0], sizes = [8, 16, 32], strides = [1, 1, 1]} : vector<8x18x32xbf16> to vector<8x16x32xbf16>
    %13 = vector.shape_cast %12 : vector<8x16x32xbf16> to vector<128x32xbf16>
    %c1_i32 = arith.constant 1 : i32
    %14 = arith.addi %4, %c1_i32 : i32
    %15 = arith.index_cast %14 : i32 to index
    %c0_3 = arith.constant 0 : index
    %c0_4 = arith.constant 0 : index
    %16 = vector.load %arg10[%15, %c0_3, %c0_4] : memref<18x18x32xbf16, #tpu.memory_space<vmem>>, vector<8x18x32xbf16>
    %17 = vector.extract_strided_slice %16 {offsets = [0, 0, 0], sizes = [8, 16, 32], strides = [1, 1, 1]} : vector<8x18x32xbf16> to vector<8x16x32xbf16>
    %18 = vector.shape_cast %17 : vector<8x16x32xbf16> to vector<128x32xbf16>
    %19 = vector.extract_strided_slice %16 {offsets = [0, 1, 0], sizes = [8, 16, 32], strides = [1, 1, 1]} : vector<8x18x32xbf16> to vector<8x16x32xbf16>
    %20 = vector.shape_cast %19 : vector<8x16x32xbf16> to vector<128x32xbf16>
    %21 = vector.extract_strided_slice %16 {offsets = [0, 2, 0], sizes = [8, 16, 32], strides = [1, 1, 1]} : vector<8x18x32xbf16> to vector<8x16x32xbf16>
    %22 = vector.shape_cast %21 : vector<8x16x32xbf16> to vector<128x32xbf16>
    %c2_i32 = arith.constant 2 : i32
    %23 = arith.addi %4, %c2_i32 : i32
    %24 = arith.index_cast %23 : i32 to index
    %c0_5 = arith.constant 0 : index
    %c0_6 = arith.constant 0 : index
    %25 = vector.load %arg10[%24, %c0_5, %c0_6] : memref<18x18x32xbf16, #tpu.memory_space<vmem>>, vector<8x18x32xbf16>
    %26 = vector.extract_strided_slice %25 {offsets = [0, 0, 0], sizes = [8, 16, 32], strides = [1, 1, 1]} : vector<8x18x32xbf16> to vector<8x16x32xbf16>
    %27 = vector.shape_cast %26 : vector<8x16x32xbf16> to vector<128x32xbf16>
    %28 = vector.extract_strided_slice %25 {offsets = [0, 1, 0], sizes = [8, 16, 32], strides = [1, 1, 1]} : vector<8x18x32xbf16> to vector<8x16x32xbf16>
    %29 = vector.shape_cast %28 : vector<8x16x32xbf16> to vector<128x32xbf16>
    %30 = vector.extract_strided_slice %25 {offsets = [0, 2, 0], sizes = [8, 16, 32], strides = [1, 1, 1]} : vector<8x18x32xbf16> to vector<8x16x32xbf16>
    %31 = vector.shape_cast %30 : vector<8x16x32xbf16> to vector<128x32xbf16>
    %32 = tpu.concatenate %9, %11, %13, %18, %20, %22, %27, %29, %31 in 1 : vector<128x32xbf16>, vector<128x32xbf16>, vector<128x32xbf16>, vector<128x32xbf16>, vector<128x32xbf16>, vector<128x32xbf16>, vector<128x32xbf16>, vector<128x32xbf16>, vector<128x32xbf16> -> vector<128x288xbf16>
    %c0_7 = arith.constant 0 : index
    %c0_8 = arith.constant 0 : index
    %33 = vector.load %arg4[%c0_7, %c0_8] : memref<288x32xbf16, #tpu.memory_space<vmem>>, vector<288x32xbf16>
    %cst = arith.constant dense<0.000000e+00> : vector<128x32xf32>
    %34 = tpu.matmul %32, %33, %cst {dimension_numbers = #tpu.dot_dimension_numbers<[1], [0], [0], [1], [0, 0, 1, 1], [], []>} : vector<128x288xbf16>, vector<288x32xbf16>, vector<128x32xf32> -> vector<128x32xf32>
    %c0_9 = arith.constant 0 : index
    %c0_10 = arith.constant 0 : index
    %35 = vector.load %arg7[%c0_9, %c0_10] : memref<1x32xf32, #tpu.memory_space<vmem>>, vector<1x32xf32>
    %36 = vector.broadcast %35 : vector<1x32xf32> to vector<128x32xf32>
    %37 = arith.addf %34, %36 : vector<128x32xf32>
    %cst_11 = arith.constant 0.000000e+00 : f32
    %38 = vector.broadcast %cst_11 : f32 to vector<128x32xf32>
    %39 = arith.maximumf %37, %38 : vector<128x32xf32>
    %40 = arith.truncf %39 : vector<128x32xf32> to vector<128x32xbf16>
    %c0_12 = arith.constant 0 : index
    %c0_13 = arith.constant 0 : index
    %41 = vector.load %arg5[%c0_12, %c0_13] : memref<32x128xbf16, #tpu.memory_space<vmem>>, vector<32x128xbf16>
    %cst_14 = arith.constant dense<0.000000e+00> : vector<128x128xf32>
    %42 = tpu.matmul %40, %41, %cst_14 {dimension_numbers = #tpu.dot_dimension_numbers<[1], [0], [0], [1], [0, 0, 1, 1], [], []>} : vector<128x32xbf16>, vector<32x128xbf16>, vector<128x128xf32> -> vector<128x128xf32>
    %c0_15 = arith.constant 0 : index
    %43 = arith.index_cast %4 : i32 to index
    %c0_16 = arith.constant 0 : index
    %c0_17 = arith.constant 0 : index
    %44 = vector.load %arg2[%c0_15, %43, %c0_16, %c0_17] : memref<1x16x16x128xbf16, #tpu.memory_space<vmem>>, vector<1x8x16x128xbf16>
    %45 = vector.shape_cast %44 : vector<1x8x16x128xbf16> to vector<8x16x128xbf16>
    %46 = arith.extf %45 : vector<8x16x128xbf16> to vector<8x16x128xf32>
    %47 = vector.shape_cast %46 : vector<8x16x128xf32> to vector<128x128xf32>
    %c0_18 = arith.constant 0 : index
    %c0_19 = arith.constant 0 : index
    %48 = vector.load %arg8[%c0_18, %c0_19] : memref<1x128xf32, #tpu.memory_space<vmem>>, vector<1x128xf32>
    %49 = vector.broadcast %48 : vector<1x128xf32> to vector<128x128xf32>
    %50 = arith.addf %42, %49 : vector<128x128xf32>
    %51 = arith.addf %50, %47 : vector<128x128xf32>
    %cst_20 = arith.constant 0.000000e+00 : f32
    %52 = vector.broadcast %cst_20 : f32 to vector<128x128xf32>
    %53 = arith.maximumf %51, %52 : vector<128x128xf32>
    %54 = vector.shape_cast %53 : vector<128x128xf32> to vector<8x16x128xf32>
    %c0_21 = arith.constant 0 : index
    %c0_22 = arith.constant 0 : index
    %c0_23 = arith.constant 0 : index
    %c0_24 = arith.constant 0 : index
    %55 = vector.load %arg9[%c0_21, %c0_22, %c0_23, %c0_24] : memref<1x8x16x128xf32, #tpu.memory_space<vmem>>, vector<1x8x16x128xf32>
    %56 = vector.shape_cast %55 : vector<1x8x16x128xf32> to vector<8x16x128xf32>
    %57 = vector.shape_cast %54 : vector<8x16x128xf32> to vector<1x8x16x128xf32>
    tpu.vector_store %arg9[%c0_21, %c0_22, %c0_23, %c0_24], %57 {strides = array<i32>} : memref<1x8x16x128xf32, #tpu.memory_space<vmem>>, vector<1x8x16x128xf32>,
    return
  }
  func.func @transform_0(%arg0: i32, %arg1: i32) -> (i32, i32, i32, i32) {
    %c0_i32 = arith.constant 0 : i32
    %c0_i32_0 = arith.constant 0 : i32
    %c0_i32_1 = arith.constant 0 : i32
    %c0_i32_2 = arith.constant 0 : i32
    return %arg0, %c0_i32, %c0_i32_0, %c0_i32_1 : i32, i32, i32, i32
  }
  func.func @transform_1(%arg0: i32, %arg1: i32) -> (i32, i32) {
    %c0_i32 = arith.constant 0 : i32
    %c0_i32_0 = arith.constant 0 : i32
    %c0_i32_1 = arith.constant 0 : i32
    return %c0_i32, %c0_i32_0 : i32, i32
  }
  func.func @transform_2(%arg0: i32, %arg1: i32) -> (i32, i32) {
    %c0_i32 = arith.constant 0 : i32
    %c0_i32_0 = arith.constant 0 : i32
    %c0_i32_1 = arith.constant 0 : i32
    return %c0_i32, %c0_i32_0 : i32, i32
  }
  func.func @transform_3(%arg0: i32, %arg1: i32) -> (i32, i32) {
    %c0_i32 = arith.constant 0 : i32
    %c0_i32_0 = arith.constant 0 : i32
    %c0_i32_1 = arith.constant 0 : i32
    return %c0_i32, %c0_i32_0 : i32, i32
  }
  func.func @transform_4(%arg0: i32, %arg1: i32) -> (i32, i32) {
    %c0_i32 = arith.constant 0 : i32
    %c0_i32_0 = arith.constant 0 : i32
    %c0_i32_1 = arith.constant 0 : i32
    return %c0_i32, %c0_i32_0 : i32, i32
  }
  func.func @transform_5(%arg0: i32, %arg1: i32) -> (i32, i32) {
    %c0_i32 = arith.constant 0 : i32
    %c0_i32_0 = arith.constant 0 : i32
    %c0_i32_1 = arith.constant 0 : i32
    return %c0_i32, %c0_i32_0 : i32, i32
  }
  func.func @transform_6(%arg0: i32, %arg1: i32) -> (i32, i32) {
    %c0_i32 = arith.constant 0 : i32
    %c0_i32_0 = arith.constant 0 : i32
    %c0_i32_1 = arith.constant 0 : i32
    return %c0_i32, %c0_i32_0 : i32, i32
  }
  func.func @transform_7(%arg0: i32, %arg1: i32) -> (i32, i32, i32, i32) {
    %c0_i32 = arith.constant 0 : i32
    %c0_i32_0 = arith.constant 0 : i32
    %c0_i32_1 = arith.constant 0 : i32
    return %arg0, %arg1, %c0_i32, %c0_i32_0 : i32, i32, i32, i32
  }
}

</mosaic_0001>

<llo_original>
// kernel: tpu_custom_call.1
$region0: #{tpu_custom_call.1}
  #allocation0 [shape = 'u32[]', space=smem, size = 0x4, offset = 0x4, fixed_abs, tag = 'smem constant byte address 0x4 - core index']
  #allocation1 [shape = 'u32[72,128]{1,0:T(1,128)}', space=vmem, size = 0x9000, scoped, tag = 'internal scratch']
  #allocation2 [shape = 'bf16[18,18,32]{2,1,0:T(8,128)(2,1)}', space=vmem, size = 0x1b000, scoped, tag = 'scratch operand']
  %s0 = inlined_call_operand.hbm [shape: bf16[2,16,16,128], index: 0, kind: input, shape index: {}]
  %s1 = inlined_call_operand.vmem [shape: bf16[128,32], index: 1, kind: input, shape index: {}]
  %s2 = inlined_call_operand.vmem [shape: bf16[288,32], index: 2, kind: input, shape index: {}]
  %s3 = inlined_call_operand.vmem [shape: bf16[32,128], index: 3, kind: input, shape index: {}]
  %s4 = inlined_call_operand.vmem [shape: f32[1,32], index: 4, kind: input, shape index: {}]
  %s5 = inlined_call_operand.vmem [shape: f32[1,32], index: 5, kind: input, shape index: {}]
  %s6 = inlined_call_operand.vmem [shape: f32[1,128], index: 6, kind: input, shape index: {}]
  %s7 = inlined_call_operand.hbm [shape: f32[2,16,16,128], index: 7, kind: output, shape index: {}]
  %s8 = sld [smem:[#allocation0]]
  $region69: #{tpu_custom_call.1} parent=0
    _
  %s10 = ssub.s32 1, %s8
  %s11 = scalar_select 0, %s10, %s8
  $region1: #{tpu_custom_call.1} parent=0
    #allocation3 [shape = 'u8[131072]{0}', space=vmem, size = 0x20000, scoped, tag = 'input window, operand 0']
    #allocation4 [shape = 's32[2]{0}', space=sflag, size = 0x8, scoped, tag = 'scoped memory for tpu_custom_call.1']
    #allocation5 [shape = 's32[2]{0}', space=sflag, size = 0x8, scoped, tag = 'scoped memory for tpu_custom_call.1']
    #allocation6 [shape = 'u8[131072]{0}', space=vmem, size = 0x20000, scoped, tag = 'output window, operand 0']
    %12 = vsyncpa [#allocation4], 0
    %s13 = scalar_lea.sflag [#allocation4], 1
    %14 = vsyncpa %s13, 0
    %15 = vsyncpa [#allocation5], 0
    %s16 = scalar_lea.sflag [#allocation5], 1
    %17 = vsyncpa %s16, 0
    loop: start=0, step=1, limit=6
    $region2: #{tpu_custom_call.1} parent=1 // loop_pre_header
      _
    $region3: #{tpu_custom_call.1} parent=1 // loop_header
      %s19 = sphi 0, %s23
      %p20 = scmp.ge.s32.totalorder %s19, 6
      %s26 = sphi 0, %s38
      %s27 = sphi 0, %s34
      %s28 = sphi 0, %s26
      %s29 = sphi 0, %s27
      %s30 = sphi 0, %s28
      %s31 = sphi 0, %s29
      %s41 = sphi 0, %s43
      %s44 = sphi 0, %s41
      %s45 = sphi 0, %s44
      %s61 = sphi 0, %s45
      %s65 = sphi 0, %s65
      %s67 = sphi 0, %s65
      %s68 = sphi 0, %s67
      %s82 = sphi 0, %s68
      %s86 = sphi 0, %s86
      %s88 = sphi 0, %s86
      %s89 = sphi 0, %s88
      %s103 = sphi 0, %s89
      %s107 = sphi 0, %s107
      %s109 = sphi 0, %s107
      %s110 = sphi 0, %s109
      %s124 = sphi 0, %s110
      %s128 = sphi 0, %s128
      %s130 = sphi 0, %s128
      %s131 = sphi 0, %s130
      %s145 = sphi 0, %s131
      %s149 = sphi 0, %s149
      %s151 = sphi 0, %s149
      %s152 = sphi 0, %s151
      %s166 = sphi 0, %s152
      %s170 = sphi 0, %s170
      %s172 = sphi 0, %s170
      %s173 = sphi 0, %s172
      %s187 = sphi 0, %s173
      %s195 = sphi 0, %s197
      %s198 = sphi 0, %s195
      %s199 = sphi 0, %s198
      %s215 = sphi 0, %s199
    $region4: #{tpu_custom_call.1} parent=1 // loop_header_branch
      %22 = sbr.rel (%p20) target = $region8
    $region5: #{tpu_custom_call.1} parent=1 // loop_body
      %s24 = ssub.s32 %s19, 1
      %s25 = ssub.s32 %s19, 2
      %s32 = sadd.s32 1, %s27
      %p33 = scmp.ge.s32.totalorder %s32, 2
      %s34 = scalar_select %p33, 0, %s32
      %s35 = sadd.s32 1, %s26
      %s36 = scalar_select %p33, %s35, %s26
      %p37 = scmp.ge.s32.totalorder %s36, 2
      %s38 = scalar_select %p37, 0, %s36
      %s39 = ssub.s32 %s26, %s38
      %p40 = scmp.eq.s32.totalorder %s39, 0
      %s42 = sadd.s32 %s41, 1
      %s43 = scalar_select %p40, %s41, %s42
      %p46 = pneg %p40
      %p47 = scmp.eq.s32.totalorder %s19, 3
      %p48 = por %p46, %p47
      %p49 = scmp.ne.s32.totalorder %s41, %s44
      %p50 = scmp.eq.s32.totalorder %s19, 0
      %p51 = por %p49, %p50
      %p52 = scmp.ne.s32.totalorder %s41, %s44
      %p53 = scmp.eq.s32.totalorder %s24, 3
      %p54 = por %p52, %p53
      %p55 = scmp.ne.s32.totalorder %s44, %s45
      %p56 = scmp.eq.s32.totalorder %s24, 0
      %p57 = por %p55, %p56
      %p58 = scmp.ne.s32.totalorder %s44, %s45
      %p59 = scmp.eq.s32.totalorder %s25, 3
      %p60 = por %p58, %p59
      %p62 = scmp.ne.s32.totalorder %s45, %s61
      %p63 = scmp.eq.s32.totalorder %s25, 0
      %p64 = por %p62, %p63
      %s66 = sadd.s32 %s65, 1
      %p69 = scmp.eq.s32.totalorder %s19, 3
      %p70 = scmp.ne.s32.totalorder %s65, %s67
      %p71 = scmp.eq.s32.totalorder %s19, 0
      %p72 = por %p70, %p71
      %p73 = scmp.ne.s32.totalorder %s65, %s67
      %p74 = scmp.eq.s32.totalorder %s24, 3
      %p75 = por %p73, %p74
      %p76 = scmp.ne.s32.totalorder %s67, %s68
      %p77 = scmp.eq.s32.totalorder %s24, 0
      %p78 = por %p76, %p77
      %p79 = scmp.ne.s32.totalorder %s67, %s68
      %p80 = scmp.eq.s32.totalorder %s25, 3
      %p81 = por %p79, %p80
      %p83 = scmp.ne.s32.totalorder %s68, %s82
      %p84 = scmp.eq.s32.totalorder %s25, 0
      %p85 = por %p83, %p84
      %s87 = sadd.s32 %s86, 1
      %p90 = scmp.eq.s32.totalorder %s19, 3
      %p91 = scmp.ne.s32.totalorder %s86, %s88
      %p92 = scmp.eq.s32.totalorder %s19, 0
      %p93 = por %p91, %p92
      %p94 = scmp.ne.s32.totalorder %s86, %s88
      %p95 = scmp.eq.s32.totalorder %s24, 3
      %p96 = por %p94, %p95
      %p97 = scmp.ne.s32.totalorder %s88, %s89
      %p98 = scmp.eq.s32.totalorder %s24, 0
      %p99 = por %p97, %p98
      %p100 = scmp.ne.s32.totalorder %s88, %s89
      %p101 = scmp.eq.s32.totalorder %s25, 3
      %p102 = por %p100, %p101
      %p104 = scmp.ne.s32.totalorder %s89, %s103
      %p105 = scmp.eq.s32.totalorder %s25, 0
      %p106 = por %p104, %p105
      %s108 = sadd.s32 %s107, 1
      %p111 = scmp.eq.s32.totalorder %s19, 3
      %p112 = scmp.ne.s32.totalorder %s107, %s109
      %p113 = scmp.eq.s32.totalorder %s19, 0
      %p114 = por %p112, %p113
      %p115 = scmp.ne.s32.totalorder %s107, %s109
      %p116 = scmp.eq.s32.totalorder %s24, 3
      %p117 = por %p115, %p116
      %p118 = scmp.ne.s32.totalorder %s109, %s110
      %p119 = scmp.eq.s32.totalorder %s24, 0
      %p120 = por %p118, %p119
      %p121 = scmp.ne.s32.totalorder %s109, %s110
      %p122 = scmp.eq.s32.totalorder %s25, 3
      %p123 = por %p121, %p122
      %p125 = scmp.ne.s32.totalorder %s110, %s124
      %p126 = scmp.eq.s32.totalorder %s25, 0
      %p127 = por %p125, %p126
      %s129 = sadd.s32 %s128, 1
      %p132 = scmp.eq.s32.totalorder %s19, 3
      %p133 = scmp.ne.s32.totalorder %s128, %s130
      %p134 = scmp.eq.s32.totalorder %s19, 0
      %p135 = por %p133, %p134
      %p136 = scmp.ne.s32.totalorder %s128, %s130
      %p137 = scmp.eq.s32.totalorder %s24, 3
      %p138 = por %p136, %p137
      %p139 = scmp.ne.s32.totalorder %s130, %s131
      %p140 = scmp.eq.s32.totalorder %s24, 0
      %p141 = por %p139, %p140
      %p142 = scmp.ne.s32.totalorder %s130, %s131
      %p143 = scmp.eq.s32.totalorder %s25, 3
      %p144 = por %p142, %p143
      %p146 = scmp.ne.s32.totalorder %s131, %s145
      %p147 = scmp.eq.s32.totalorder %s25, 0
      %p148 = por %p146, %p147
      %s150 = sadd.s32 %s149, 1
      %p153 = scmp.eq.s32.totalorder %s19, 3
      %p154 = scmp.ne.s32.totalorder %s149, %s151
      %p155 = scmp.eq.s32.totalorder %s19, 0
      %p156 = por %p154, %p155
      %p157 = scmp.ne.s32.totalorder %s149, %s151
      %p158 = scmp.eq.s32.totalorder %s24, 3
      %p159 = por %p157, %p158
      %p160 = scmp.ne.s32.totalorder %s151, %s152
      %p161 = scmp.eq.s32.totalorder %s24, 0
      %p162 = por %p160, %p161
      %p163 = scmp.ne.s32.totalorder %s151, %s152
      %p164 = scmp.eq.s32.totalorder %s25, 3
      %p165 = por %p163, %p164
      %p167 = scmp.ne.s32.totalorder %s152, %s166
      %p168 = scmp.eq.s32.totalorder %s25, 0
      %p169 = por %p167, %p168
      %s171 = sadd.s32 %s170, 1
      %p174 = scmp.eq.s32.totalorder %s19, 3
      %p175 = scmp.ne.s32.totalorder %s170, %s172
      %p176 = scmp.eq.s32.totalorder %s19, 0
      %p177 = por %p175, %p176
      %p178 = scmp.ne.s32.totalorder %s170, %s172
      %p179 = scmp.eq.s32.totalorder %s24, 3
      %p180 = por %p178, %p179
      %p181 = scmp.ne.s32.totalorder %s172, %s173
      %p182 = scmp.eq.s32.totalorder %s24, 0
      %p183 = por %p181, %p182
      %p184 = scmp.ne.s32.totalorder %s172, %s173
      %p185 = scmp.eq.s32.totalorder %s25, 3
      %p186 = por %p184, %p185
      %p188 = scmp.ne.s32.totalorder %s173, %s187
      %p189 = scmp.eq.s32.totalorder %s25, 0
      %p190 = por %p188, %p189
      %s191 = ssub.s32 %s26, %s38
      %s192 = ssub.s32 %s27, %s34
      %s193 = sor.u32 %s191, %s192
      %p194 = scmp.eq.s32.totalorder %s193, 0
      %s196 = sadd.s32 %s195, 1
      %s197 = scalar_select %p194, %s195, %s196
      %p200 = pneg %p194
      %p201 = scmp.eq.s32.totalorder %s19, 3
      %p202 = por %p200, %p201
      %p203 = scmp.ne.s32.totalorder %s195, %s198
      %p204 = scmp.eq.s32.totalorder %s19, 0
      %p205 = por %p203, %p204
      %p206 = scmp.ne.s32.totalorder %s195, %s198
      %p207 = scmp.eq.s32.totalorder %s24, 3
      %p208 = por %p206, %p207
      %p209 = scmp.ne.s32.totalorder %s198, %s199
      %p210 = scmp.eq.s32.totalorder %s24, 0
      %p211 = por %p209, %p210
      %p212 = scmp.ne.s32.totalorder %s198, %s199
      %p213 = scmp.eq.s32.totalorder %s25, 3
      %p214 = por %p212, %p213
      %p216 = scmp.ne.s32.totalorder %s199, %s215
      %p217 = scmp.eq.s32.totalorder %s25, 0
      %p218 = por %p216, %p217
      %p219 = scmp.le.s32.totalorder 1, %s19
      %p220 = scmp.lt.s32.totalorder %s19, 5
      %p221 = pnand %p219, %p220
      %p222 = pneg %p221
      // Predicated region
      $region9: #{tpu_custom_call.1} parent=5 // pred_check
        _
      $region10: #{tpu_custom_call.1} parent=5 // pred_check_branch
        %224 = sbr.rel (%p221) target = $region12
      $region11: #{tpu_custom_call.1} parent=5 // pred_region
        %s225 = ssub.s32 %s19, 1
        // Predicated region
        $region13: #{tpu_custom_call.1} parent=11 // pred_check
          %p226 = pneg %p78
        $region14: #{tpu_custom_call.1} parent=11 // pred_check_branch
          %228 = sbr.rel (%p226) target = $region16
        $region15: #{tpu_custom_call.1} parent=11 // pred_region
          _
        $region16: #{tpu_custom_call.1} parent=11 // pred_fallthru
          _
        // Predicated region
        $region17: #{tpu_custom_call.1} parent=11 // pred_check
          %p229 = pneg %p99
        $region18: #{tpu_custom_call.1} parent=11 // pred_check_branch
          %231 = sbr.rel (%p229) target = $region20
        $region19: #{tpu_custom_call.1} parent=11 // pred_region
          _
        $region20: #{tpu_custom_call.1} parent=11 // pred_fallthru
          _
        // Predicated region
        $region21: #{tpu_custom_call.1} parent=11 // pred_check
          %p232 = pneg %p120
        $region22: #{tpu_custom_call.1} parent=11 // pred_check_branch
          %234 = sbr.rel (%p232) target = $region24
        $region23: #{tpu_custom_call.1} parent=11 // pred_region
          _
        $region24: #{tpu_custom_call.1} parent=11 // pred_fallthru
          _
        // Predicated region
        $region25: #{tpu_custom_call.1} parent=11 // pred_check
          %p235 = pneg %p141
        $region26: #{tpu_custom_call.1} parent=11 // pred_check_branch
          %237 = sbr.rel (%p235) target = $region28
        $region27: #{tpu_custom_call.1} parent=11 // pred_region
          _
        $region28: #{tpu_custom_call.1} parent=11 // pred_fallthru
          _
        // Predicated region
        $region29: #{tpu_custom_call.1} parent=11 // pred_check
          %p238 = pneg %p162
        $region30: #{tpu_custom_call.1} parent=11 // pred_check_branch
          %240 = sbr.rel (%p238) target = $region32
        $region31: #{tpu_custom_call.1} parent=11 // pred_region
          _
        $region32: #{tpu_custom_call.1} parent=11 // pred_fallthru
          _
        // Predicated region
        $region33: #{tpu_custom_call.1} parent=11 // pred_check
          %p241 = pneg %p183
        $region34: #{tpu_custom_call.1} parent=11 // pred_check_branch
          %243 = sbr.rel (%p241) target = $region36
        $region35: #{tpu_custom_call.1} parent=11 // pred_region
          _
        $region36: #{tpu_custom_call.1} parent=11 // pred_fallthru
          _
      $region12: #{tpu_custom_call.1} parent=5 // pred_fallthru
        _
      %p244 = scmp.lt.s32.totalorder %s19, 4
      // Predicated region
      $region37: #{tpu_custom_call.1} parent=5 // pred_check
        %p245 = pneg %p244
      $region38: #{tpu_custom_call.1} parent=5 // pred_check_branch
        %247 = sbr.rel (%p245) target = $region40
      $region39: #{tpu_custom_call.1} parent=5 // pred_region
        // Predicated region
        $region41: #{tpu_custom_call.1} parent=39 // pred_check
          %p248 = pneg %p51
        $region42: #{tpu_custom_call.1} parent=39 // pred_check_branch
          %250 = sbr.rel (%p248) target = $region44
        $region43: #{tpu_custom_call.1} parent=39 // pred_region
          %s251 = sand.u32 %s41, 1
          %s252 = scalar_lea.sflag [#allocation4], %s251
          %s253 = sand.u32 %s41, 1
          %s254 = smul.addr %s253, 128
          %s255 = scalar_lea.vmem [#allocation3], %s254
          %257 = vsyncadd %s252, 0
          %s258 = smul.addr %s26, 32
          %s259 = smul.addr %s258, 4
          %s260 = scalar_lea.hbm %s0, %s259
          %s261 = sshll.u32 %s260, 4
          %s262 = int_to_ptr.hbm [resolvable:$true] %s261
          %s263 = sshll.u32 %s255, 4
          %s264 = int_to_ptr.vmem [resolvable:$true] %s263
          %269 = dma.hbm_to_vmem [thread:$0]  %s262, 2048, %s264, %s252, 64, 64, 4
        $region44: #{tpu_custom_call.1} parent=39 // pred_fallthru
          _
      $region40: #{tpu_custom_call.1} parent=5 // pred_fallthru
        _
      %p270 = scmp.le.s32.totalorder 1, %s19
      %p271 = scmp.lt.s32.totalorder %s19, 5
      %p272 = pnand %p270, %p271
      %p273 = pneg %p272
      // Predicated region
      $region45: #{tpu_custom_call.1} parent=5 // pred_check
        _
      $region46: #{tpu_custom_call.1} parent=5 // pred_check_branch
        %275 = sbr.rel (%p272) target = $region48
      $region47: #{tpu_custom_call.1} parent=5 // pred_region
        %s276 = ssub.s32 %s19, 1
        %s277 = sand.u32 %s44, 1
        %s278 = scalar_lea.sflag [#allocation4], %s277
        %s279 = sand.u32 %s44, 1
        %s280 = smul.addr %s279, 128
        %s281 = scalar_lea.vmem [#allocation3], %s280
        // Predicated region
        $region49: #{tpu_custom_call.1} parent=47 // pred_check
          %p282 = pneg %p57
        $region50: #{tpu_custom_call.1} parent=47 // pred_check_branch
          %284 = sbr.rel (%p282) target = $region52
        $region51: #{tpu_custom_call.1} parent=47 // pred_region
          %286 = dma.done %s278, 2048
        $region52: #{tpu_custom_call.1} parent=47 // pred_fallthru
          _
        %s287 = sand.u32 %s44, 1
        %s288 = scalar_lea.sflag [#allocation4], %s287
        %s289 = sand.u32 %s44, 1
        %s290 = smul.addr %s289, 128
        %s291 = scalar_lea.vmem [#allocation3], %s290
        %p292 = pneg %p57
        %p293 = pneg %p54
        %p294 = pneg %p78
        %p295 = pneg %p75
        %p296 = pneg %p99
        %p297 = pneg %p96
        %p298 = pneg %p120
        %p299 = pneg %p117
        %p300 = pneg %p141
        %p301 = pneg %p138
        %p302 = pneg %p162
        %p303 = pneg %p159
        %p304 = pneg %p183
        %p305 = pneg %p180
        %p306 = pneg %p211
        %p307 = pneg %p208
        %s308 = sand.u32 %s198, 1
        %s309 = scalar_lea.sflag [#allocation5], %s308
        %s310 = sand.u32 %s198, 1
        %s311 = smul.addr %s310, 128
        %s312 = scalar_lea.vmem [#allocation6], %s311
        %s313 = smul.u32 8, %s29
        %p315 = scmp.eq.s32.totalorder %s29, 0
        // Predicated region
        $region53: #{tpu_custom_call.1} parent=47 // pred_check
          %p316 = pneg %p315
        $region54: #{tpu_custom_call.1} parent=47 // pred_check_branch
          %318 = sbr.rel (%p316) target = $region56
        $region55: #{tpu_custom_call.1} parent=47 // pred_region
          %v319 = vld [vmem:[%s281] sm:$0xf]
          %v320 = vld [vmem:[%s281 + $0x4] sm:$0xf]
          %v321 = vld [vmem:[%s281 + $0x8] sm:$0xf]
          %v322 = vld [vmem:[%s281 + $0xc] sm:$0xf]
          %v323 = vld [vmem:[%s281 + $0x10] sm:$0xf]
          %v324 = vld [vmem:[%s281 + $0x14] sm:$0xf]
          %v325 = vld [vmem:[%s281 + $0x18] sm:$0xf]
          %v326 = vld [vmem:[%s281 + $0x1c] sm:$0xf]
          %v327 = vld [vmem:[%s281 + $0x20] sm:$0xf]
          %v328 = vld [vmem:[%s281 + $0x24] sm:$0xf]
          %v329 = vld [vmem:[%s281 + $0x28] sm:$0xf]
          %v330 = vld [vmem:[%s281 + $0x2c] sm:$0xf]
          %v331 = vld [vmem:[%s281 + $0x30] sm:$0xf]
          %v332 = vld [vmem:[%s281 + $0x34] sm:$0xf]
          %v333 = vld [vmem:[%s281 + $0x38] sm:$0xf]
          %v334 = vld [vmem:[%s281 + $0x3c] sm:$0xf]
          %v335 = vld [vmem:[%s281 + $0x40] sm:$0xf]
          %v336 = vld [vmem:[%s281 + $0x44] sm:$0xf]
          %v337 = vld [vmem:[%s281 + $0x48] sm:$0xf]
          %v338 = vld [vmem:[%s281 + $0x4c] sm:$0xf]
          %v339 = vld [vmem:[%s281 + $0x50] sm:$0xf]
          %v340 = vld [vmem:[%s281 + $0x54] sm:$0xf]
          %v341 = vld [vmem:[%s281 + $0x58] sm:$0xf]
          %v342 = vld [vmem:[%s281 + $0x5c] sm:$0xf]
          %v343 = vld [vmem:[%s281 + $0x60] sm:$0xf]
          %v344 = vld [vmem:[%s281 + $0x64] sm:$0xf]
          %v345 = vld [vmem:[%s281 + $0x68] sm:$0xf]
          %v346 = vld [vmem:[%s281 + $0x6c] sm:$0xf]
          %v347 = vld [vmem:[%s281 + $0x70] sm:$0xf]
          %v348 = vld [vmem:[%s281 + $0x74] sm:$0xf]
          %v349 = vld [vmem:[%s281 + $0x78] sm:$0xf]
          %v350 = vld [vmem:[%s281 + $0x7c] sm:$0xf]
          %v351 = vld [vmem:[%s1] sm:$0xf]
          %v352 = vld [vmem:[%s1 + $0x4] sm:$0xf]
          %v353 = vld [vmem:[%s1 + $0x8] sm:$0xf]
          %v354 = vld [vmem:[%s1 + $0xc] sm:$0xf]
          %v355 = vld [vmem:[%s1 + $0x10] sm:$0xf]
          %v356 = vld [vmem:[%s1 + $0x14] sm:$0xf]
          %v357 = vld [vmem:[%s1 + $0x18] sm:$0xf]
          %v358 = vld [vmem:[%s1 + $0x1c] sm:$0xf]
          %v359 = vld [vmem:[%s1 + $0x20] sm:$0xf]
          %v360 = vld [vmem:[%s1 + $0x24] sm:$0xf]
          %v361 = vld [vmem:[%s1 + $0x28] sm:$0xf]
          %v362 = vld [vmem:[%s1 + $0x2c] sm:$0xf]
          %v363 = vld [vmem:[%s1 + $0x30] sm:$0xf]
          %v364 = vld [vmem:[%s1 + $0x34] sm:$0xf]
          %v365 = vld [vmem:[%s1 + $0x38] sm:$0xf]
          %v366 = vld [vmem:[%s1 + $0x3c] sm:$0xf]
          %v367 = vld [vmem:[%s4] sm:$0x1]
          %v369 = vperm.slane %v367, 0
          %v403 = vunpack.c.l.b16 %v319
          %v404 = vunpack.c.l.b16 %v320
          %v405 = vunpack.c.l.b16 %v321
          %v406 = vunpack.c.l.b16 %v322
          %v407 = vunpack.c.l.b16 %v323
          %v408 = vunpack.c.l.b16 %v324
          %v409 = vunpack.c.l.b16 %v325
          %v410 = vunpack.c.l.b16 %v326
          %v411 = vunpack.c.l.b16 %v327
          %v412 = vunpack.c.l.b16 %v328
          %v413 = vunpack.c.l.b16 %v329
          %v414 = vunpack.c.l.b16 %v330
          %v415 = vunpack.c.l.b16 %v331
          %v416 = vunpack.c.l.b16 %v332
          %v417 = vunpack.c.l.b16 %v333
          %v418 = vunpack.c.l.b16 %v334
          %v419 = vunpack.c.l.b16 %v335
          %v420 = vunpack.c.l.b16 %v336
          %v421 = vunpack.c.l.b16 %v337
          %v422 = vunpack.c.l.b16 %v338
          %v423 = vunpack.c.l.b16 %v339
          %v424 = vunpack.c.l.b16 %v340
          %v425 = vunpack.c.l.b16 %v341
          %v426 = vunpack.c.l.b16 %v342
          %v427 = vunpack.c.l.b16 %v343
          %v428 = vunpack.c.l.b16 %v344
          %v429 = vunpack.c.l.b16 %v345
          %v430 = vunpack.c.l.b16 %v346
          %v431 = vunpack.c.l.b16 %v347
          %v432 = vunpack.c.l.b16 %v348
          %v433 = vunpack.c.l.b16 %v349
          %v434 = vunpack.c.l.b16 %v350
          %v435 = vpack.c.b16 %v404, %v403
          %v436 = vpack.c.b16 %v406, %v405
          %v437 = vpack.c.b16 %v408, %v407
          %v438 = vpack.c.b16 %v410, %v409
          %v439 = vpack.c.b16 %v412, %v411
          %v440 = vpack.c.b16 %v414, %v413
          %v441 = vpack.c.b16 %v416, %v415
          %v442 = vpack.c.b16 %v418, %v417
          %v443 = vpack.c.b16 %v420, %v419
          %v444 = vpack.c.b16 %v422, %v421
          %v445 = vpack.c.b16 %v424, %v423
          %v446 = vpack.c.b16 %v426, %v425
          %v447 = vpack.c.b16 %v428, %v427
          %v448 = vpack.c.b16 %v430, %v429
          %v449 = vpack.c.b16 %v432, %v431
          %v450 = vpack.c.b16 %v434, %v433
          %v483 = vunpack.c.l.b16 %v351
          %v484 = vunpack.c.l.b16 %v352
          %v485 = vunpack.c.l.b16 %v353
          %v486 = vunpack.c.l.b16 %v354
          %v487 = vunpack.c.l.b16 %v355
          %v488 = vunpack.c.l.b16 %v356
          %v489 = vunpack.c.l.b16 %v357
          %v490 = vunpack.c.l.b16 %v358
          %v491 = vunpack.c.l.b16 %v359
          %v492 = vunpack.c.l.b16 %v360
          %v493 = vunpack.c.l.b16 %v361
          %v494 = vunpack.c.l.b16 %v362
          %v495 = vunpack.c.l.b16 %v363
          %v496 = vunpack.c.l.b16 %v364
          %v497 = vunpack.c.l.b16 %v365
          %v498 = vunpack.c.l.b16 %v366
          %v499 = vpack.c.b16 %v484, %v483
          %v500 = vpack.c.b16 %v486, %v485
          %v501 = vpack.c.b16 %v488, %v487
          %v502 = vpack.c.b16 %v490, %v489
          %v503 = vpack.c.b16 %v492, %v491
          %v504 = vpack.c.b16 %v494, %v493
          %v505 = vpack.c.b16 %v496, %v495
          %v506 = vpack.c.b16 %v498, %v497
          %515 = vmatpush.bf16.msra.mxu0 %v506
          %516 = vmatpush.bf16.msra.mxu0 %v505
          %517 = vmatpush.bf16.msra.mxu0 %v504
          %518 = vmatpush.bf16.msra.mxu0 %v503
          %519 = vmatpush.bf16.msra.mxu0 %v502
          %520 = vmatpush.bf16.msra.mxu0 %v501
          %521 = vmatpush.bf16.msra.mxu0 %v500
          %522 = vmatpush.bf16.msra.mxu0 %v499
          %523 = vmatmul.bf16.gmra.mxu0 %v435
          %v524 = vpop.f32.mrf.mxu0
          %v525 = vadd.f32 %v369, %v524
          %v526 = vpop.f32.mrf.mxu0
          %v527 = vadd.f32 %v369, %v526
          %528 = vmatmul.bf16.gmra.mxu0 %v436
          %v529 = vpop.f32.mrf.mxu0
          %v530 = vadd.f32 %v369, %v529
          %v531 = vpop.f32.mrf.mxu0
          %v532 = vadd.f32 %v369, %v531
          %533 = vmatmul.bf16.gmra.mxu0 %v437
          %v534 = vpop.f32.mrf.mxu0
          %v535 = vadd.f32 %v369, %v534
          %v536 = vpop.f32.mrf.mxu0
          %v537 = vadd.f32 %v369, %v536
          %538 = vmatmul.bf16.gmra.mxu0 %v438
          %v539 = vpop.f32.mrf.mxu0
          %v540 = vadd.f32 %v369, %v539
          %v541 = vpop.f32.mrf.mxu0
          %v542 = vadd.f32 %v369, %v541
          %543 = vmatmul.bf16.gmra.mxu0 %v439
          %v544 = vpop.f32.mrf.mxu0
          %v545 = vadd.f32 %v369, %v544
          %v546 = vpop.f32.mrf.mxu0
          %v547 = vadd.f32 %v369, %v546
          %548 = vmatmul.bf16.gmra.mxu0 %v440
          %v549 = vpop.f32.mrf.mxu0
          %v550 = vadd.f32 %v369, %v549
          %v551 = vpop.f32.mrf.mxu0
          %v552 = vadd.f32 %v369, %v551
          %553 = vmatmul.bf16.gmra.mxu0 %v441
          %v554 = vpop.f32.mrf.mxu0
          %v555 = vadd.f32 %v369, %v554
          %v556 = vpop.f32.mrf.mxu0
          %v557 = vadd.f32 %v369, %v556
          %558 = vmatmul.bf16.gmra.mxu0 %v442
          %v559 = vpop.f32.mrf.mxu0
          %v560 = vadd.f32 %v369, %v559
          %v561 = vpop.f32.mrf.mxu0
          %v562 = vadd.f32 %v369, %v561
          %563 = vmatmul.bf16.gmra.mxu0 %v443
          %v564 = vpop.f32.mrf.mxu0
          %v565 = vadd.f32 %v369, %v564
          %v566 = vpop.f32.mrf.mxu0
          %v567 = vadd.f32 %v369, %v566
          %568 = vmatmul.bf16.gmra.mxu0 %v444
          %v569 = vpop.f32.mrf.mxu0
          %v570 = vadd.f32 %v369, %v569
          %v571 = vpop.f32.mrf.mxu0
          %v572 = vadd.f32 %v369, %v571
          %573 = vmatmul.bf16.gmra.mxu0 %v445
          %v574 = vpop.f32.mrf.mxu0
          %v575 = vadd.f32 %v369, %v574
          %v576 = vpop.f32.mrf.mxu0
          %v577 = vadd.f32 %v369, %v576
          %578 = vmatmul.bf16.gmra.mxu0 %v446
          %v579 = vpop.f32.mrf.mxu0
          %v580 = vadd.f32 %v369, %v579
          %v581 = vpop.f32.mrf.mxu0
          %v582 = vadd.f32 %v369, %v581
          %583 = vmatmul.bf16.gmra.mxu0 %v447
          %v584 = vpop.f32.mrf.mxu0
          %v585 = vadd.f32 %v369, %v584
          %v586 = vpop.f32.mrf.mxu0
          %v587 = vadd.f32 %v369, %v586
          %588 = vmatmul.bf16.gmra.mxu0 %v448
          %v589 = vpop.f32.mrf.mxu0
          %v590 = vadd.f32 %v369, %v589
          %v591 = vpop.f32.mrf.mxu0
          %v592 = vadd.f32 %v369, %v591
          %593 = vmatmul.bf16.gmra.mxu0 %v449
          %v594 = vpop.f32.mrf.mxu0
          %v595 = vadd.f32 %v369, %v594
          %v596 = vpop.f32.mrf.mxu0
          %v597 = vadd.f32 %v369, %v596
          %598 = vmatmul.bf16.gmra.mxu0 %v450
          %v599 = vpop.f32.mrf.mxu0
          %v600 = vadd.f32 %v369, %v599
          %v601 = vpop.f32.mrf.mxu0
          %v602 = vadd.f32 %v369, %v601
          %603 = vdwg.mxu0
          %v604 = vmax.f32 %v525, 0.0
          %v605 = vmax.f32 %v527, 0.0
          %v606 = vmax.f32 %v530, 0.0
          %v607 = vmax.f32 %v532, 0.0
          %v608 = vmax.f32 %v535, 0.0
          %v609 = vmax.f32 %v537, 0.0
          %v610 = vmax.f32 %v540, 0.0
          %v611 = vmax.f32 %v542, 0.0
          %v612 = vmax.f32 %v545, 0.0
          %v613 = vmax.f32 %v547, 0.0
          %v614 = vmax.f32 %v550, 0.0
          %v615 = vmax.f32 %v552, 0.0
          %v616 = vmax.f32 %v555, 0.0
          %v617 = vmax.f32 %v557, 0.0
          %v618 = vmax.f32 %v560, 0.0
          %v619 = vmax.f32 %v562, 0.0
          %v620 = vmax.f32 %v565, 0.0
          %v621 = vmax.f32 %v567, 0.0
          %v622 = vmax.f32 %v570, 0.0
          %v623 = vmax.f32 %v572, 0.0
          %v624 = vmax.f32 %v575, 0.0
          %v625 = vmax.f32 %v577, 0.0
          %v626 = vmax.f32 %v580, 0.0
          %v627 = vmax.f32 %v582, 0.0
          %v628 = vmax.f32 %v585, 0.0
          %v629 = vmax.f32 %v587, 0.0
          %v630 = vmax.f32 %v590, 0.0
          %v631 = vmax.f32 %v592, 0.0
          %v632 = vmax.f32 %v595, 0.0
          %v633 = vmax.f32 %v597, 0.0
          %v634 = vmax.f32 %v600, 0.0
          %v635 = vmax.f32 %v602, 0.0
          %v636 = vpack.c.bf16 %v604, %v604
          %v637 = vpack.c.bf16 %v605, %v605
          %v638 = vpack.c.bf16 %v606, %v606
          %v639 = vpack.c.bf16 %v607, %v607
          %v640 = vpack.c.bf16 %v608, %v608
          %v641 = vpack.c.bf16 %v609, %v609
          %v642 = vpack.c.bf16 %v610, %v610
          %v643 = vpack.c.bf16 %v611, %v611
          %v644 = vpack.c.bf16 %v612, %v612
          %v645 = vpack.c.bf16 %v613, %v613
          %v646 = vpack.c.bf16 %v614, %v614
          %v647 = vpack.c.bf16 %v615, %v615
          %v648 = vpack.c.bf16 %v616, %v616
          %v649 = vpack.c.bf16 %v617, %v617
          %v650 = vpack.c.bf16 %v618, %v618
          %v651 = vpack.c.bf16 %v619, %v619
          %v652 = vpack.c.bf16 %v620, %v620
          %v653 = vpack.c.bf16 %v621, %v621
          %v654 = vpack.c.bf16 %v622, %v622
          %v655 = vpack.c.bf16 %v623, %v623
          %v656 = vpack.c.bf16 %v624, %v624
          %v657 = vpack.c.bf16 %v625, %v625
          %v658 = vpack.c.bf16 %v626, %v626
          %v659 = vpack.c.bf16 %v627, %v627
          %v660 = vpack.c.bf16 %v628, %v628
          %v661 = vpack.c.bf16 %v629, %v629
          %v662 = vpack.c.bf16 %v630, %v630
          %v663 = vpack.c.bf16 %v631, %v631
          %v664 = vpack.c.bf16 %v632, %v632
          %v665 = vpack.c.bf16 %v633, %v633
          %v666 = vpack.c.bf16 %v634, %v634
          %v667 = vpack.c.bf16 %v635, %v635
          %v700 = vunpack.c.l.b16 %v636
          %v701 = vunpack.c.l.b16 %v637
          %v702 = vunpack.c.l.b16 %v638
          %v703 = vunpack.c.l.b16 %v639
          %v704 = vunpack.c.l.b16 %v640
          %v705 = vunpack.c.l.b16 %v641
          %v706 = vunpack.c.l.b16 %v642
          %v707 = vunpack.c.l.b16 %v643
          %v708 = vunpack.c.l.b16 %v644
          %v709 = vunpack.c.l.b16 %v645
          %v710 = vunpack.c.l.b16 %v646
          %v711 = vunpack.c.l.b16 %v647
          %v712 = vunpack.c.l.b16 %v648
          %v713 = vunpack.c.l.b16 %v649
          %v714 = vunpack.c.l.b16 %v650
          %v715 = vunpack.c.l.b16 %v651
          %v716 = vunpack.c.l.b16 %v652
          %v717 = vunpack.c.l.b16 %v653
          %v718 = vunpack.c.l.b16 %v654
          %v719 = vunpack.c.l.b16 %v655
          %v720 = vunpack.c.l.b16 %v656
          %v721 = vunpack.c.l.b16 %v657
          %v722 = vunpack.c.l.b16 %v658
          %v723 = vunpack.c.l.b16 %v659
          %v724 = vunpack.c.l.b16 %v660
          %v725 = vunpack.c.l.b16 %v661
          %v726 = vunpack.c.l.b16 %v662
          %v727 = vunpack.c.l.b16 %v663
          %v728 = vunpack.c.l.b16 %v664
          %v729 = vunpack.c.l.b16 %v665
          %v730 = vunpack.c.l.b16 %v666
          %v731 = vunpack.c.l.b16 %v667
          %v732 = vpack.c.b16 %v701, %v700
          %v733 = vpack.c.b16 %v703, %v702
          %v734 = vpack.c.b16 %v705, %v704
          %v735 = vpack.c.b16 %v707, %v706
          %v736 = vpack.c.b16 %v709, %v708
          %v737 = vpack.c.b16 %v711, %v710
          %v738 = vpack.c.b16 %v713, %v712
          %v739 = vpack.c.b16 %v715, %v714
          %v740 = vpack.c.b16 %v717, %v716
          %v741 = vpack.c.b16 %v719, %v718
          %v742 = vpack.c.b16 %v721, %v720
          %v743 = vpack.c.b16 %v723, %v722
          %v744 = vpack.c.b16 %v725, %v724
          %v745 = vpack.c.b16 %v727, %v726
          %v746 = vpack.c.b16 %v729, %v728
          %v747 = vpack.c.b16 %v731, %v730
          %v749 = vshrl.u32 0, 16
          %v751 = vrot.slane %v749, 7
          %v752 = vshll.u32 0, 16
          %v754 = vor.u32 %v751, %v752
          %v756 = vshrl.u32 %v732, 16
          %v758 = vrot.slane %v756, 7
          %v759 = vshll.u32 %v732, 16
          %v761 = vor.u32 %v758, %v759
          %v763 = vshrl.u32 %v733, 16
          %v765 = vrot.slane %v763, 7
          %v766 = vshll.u32 %v733, 16
          %v768 = vor.u32 %v765, %v766
          %v770 = vshrl.u32 %v734, 16
          %v772 = vrot.slane %v770, 7
          %v773 = vshll.u32 %v734, 16
          %v775 = vor.u32 %v772, %v773
          %v777 = vshrl.u32 %v735, 16
          %v779 = vrot.slane %v777, 7
          %v780 = vshll.u32 %v735, 16
          %v782 = vor.u32 %v779, %v780
          %v784 = vshrl.u32 %v736, 16
          %v786 = vrot.slane %v784, 7
          %v787 = vshll.u32 %v736, 16
          %v789 = vor.u32 %v786, %v787
          %v791 = vshrl.u32 %v737, 16
          %v793 = vrot.slane %v791, 7
          %v794 = vshll.u32 %v737, 16
          %v796 = vor.u32 %v793, %v794
          %v798 = vshrl.u32 %v738, 16
          %v800 = vrot.slane %v798, 7
          %v801 = vshll.u32 %v738, 16
          %v803 = vor.u32 %v800, %v801
          %v805 = vshrl.u32 %v739, 16
          %v807 = vrot.slane %v805, 7
          %v808 = vshll.u32 %v739, 16
          %v810 = vor.u32 %v807, %v808
          %v812 = vshrl.u32 %v740, 16
          %v814 = vrot.slane %v812, 7
          %v815 = vshll.u32 %v740, 16
          %v817 = vor.u32 %v814, %v815
          %v819 = vshrl.u32 %v741, 16
          %v821 = vrot.slane %v819, 7
          %v822 = vshll.u32 %v741, 16
          %v824 = vor.u32 %v821, %v822
          %v826 = vshrl.u32 %v742, 16
          %v828 = vrot.slane %v826, 7
          %v829 = vshll.u32 %v742, 16
          %v831 = vor.u32 %v828, %v829
          %v833 = vshrl.u32 %v743, 16
          %v835 = vrot.slane %v833, 7
          %v836 = vshll.u32 %v743, 16
          %v838 = vor.u32 %v835, %v836
          %v840 = vshrl.u32 %v744, 16
          %v842 = vrot.slane %v840, 7
          %v843 = vshll.u32 %v744, 16
          %v845 = vor.u32 %v842, %v843
          %v847 = vshrl.u32 %v745, 16
          %v849 = vrot.slane %v847, 7
          %v850 = vshll.u32 %v745, 16
          %v852 = vor.u32 %v849, %v850
          %v854 = vshrl.u32 %v746, 16
          %v856 = vrot.slane %v854, 7
          %v857 = vshll.u32 %v746, 16
          %v859 = vor.u32 %v856, %v857
          %v861 = vshrl.u32 %v747, 16
          %v863 = vrot.slane %v861, 7
          %v864 = vshll.u32 %v747, 16
          %v866 = vor.u32 %v863, %v864
          %vm901 = vcmask 1040384
          %vm902 = vsmask.f32 256
          %vm903 = vmand %vm901, %vm902
          %v904 = vsel %vm903, 0, %v754
          %v905 = vsel %vm903, 0, %v761
          %v906 = vsel %vm903, 0, %v768
          %v907 = vsel %vm903, 0, %v775
          %v908 = vsel %vm903, 0, %v782
          %v909 = vsel %vm903, 0, %v789
          %v910 = vsel %vm903, 0, %v796
          %v911 = vsel %vm903, 0, %v803
          %v912 = vsel %vm903, 0, %v810
          %v913 = vsel %vm903, 0, %v817
          %v914 = vsel %vm903, 0, %v824
          %v915 = vsel %vm903, 0, %v831
          %v916 = vsel %vm903, 0, %v838
          %v917 = vsel %vm903, 0, %v845
          %v918 = vsel %vm903, 0, %v852
          %v919 = vsel %vm903, 0, %v859
          %v920 = vsel %vm903, 0, %v866
          %v921 = vsel %vm903, %v751, 0
          %v922 = vsel %vm903, %v758, 0
          %v923 = vsel %vm903, %v765, 0
          %v924 = vsel %vm903, %v772, 0
          %v925 = vsel %vm903, %v779, 0
          %v926 = vsel %vm903, %v786, 0
          %v927 = vsel %vm903, %v793, 0
          %v928 = vsel %vm903, %v800, 0
          %v929 = vsel %vm903, %v807, 0
          %v930 = vsel %vm903, %v814, 0
          %v931 = vsel %vm903, %v821, 0
          %v932 = vsel %vm903, %v828, 0
          %v933 = vsel %vm903, %v835, 0
          %v934 = vsel %vm903, %v842, 0
          %v935 = vsel %vm903, %v849, 0
          %v936 = vsel %vm903, %v856, 0
          %v937 = vsel %vm903, %v863, 0
          %v972 = vunpack.c.l.b16 %v904
          %v973 = vunpack.c.h.b16 %v904
          %v974 = vunpack.c.l.b16 %v921
          %v975 = vunpack.c.l.b16 %v905
          %v976 = vunpack.c.h.b16 %v905
          %v977 = vunpack.c.l.b16 %v922
          %v978 = vunpack.c.l.b16 %v906
          %v979 = vunpack.c.h.b16 %v906
          %v980 = vunpack.c.l.b16 %v923
          %v981 = vunpack.c.l.b16 %v907
          %v982 = vunpack.c.h.b16 %v907
          %v983 = vunpack.c.l.b16 %v924
          %v984 = vunpack.c.l.b16 %v908
          %v985 = vunpack.c.h.b16 %v908
          %v986 = vunpack.c.l.b16 %v925
          %v987 = vunpack.c.l.b16 %v909
          %v988 = vunpack.c.h.b16 %v909
          %v989 = vunpack.c.l.b16 %v926
          %v990 = vunpack.c.l.b16 %v910
          %v991 = vunpack.c.h.b16 %v910
          %v992 = vunpack.c.l.b16 %v927
          %v993 = vunpack.c.l.b16 %v911
          %v994 = vunpack.c.h.b16 %v911
          %v995 = vunpack.c.l.b16 %v928
          %v996 = vunpack.c.l.b16 %v912
          %v997 = vunpack.c.h.b16 %v912
          %v998 = vunpack.c.l.b16 %v929
          %v999 = vunpack.c.l.b16 %v913
          %v1000 = vunpack.c.h.b16 %v913
          %v1001 = vunpack.c.l.b16 %v930
          %v1002 = vunpack.c.l.b16 %v914
          %v1003 = vunpack.c.h.b16 %v914
          %v1004 = vunpack.c.l.b16 %v931
          %v1005 = vunpack.c.l.b16 %v915
          %v1006 = vunpack.c.h.b16 %v915
          %v1007 = vunpack.c.l.b16 %v932
          %v1008 = vunpack.c.l.b16 %v916
          %v1009 = vunpack.c.h.b16 %v916
          %v1010 = vunpack.c.l.b16 %v933
          %v1011 = vunpack.c.l.b16 %v917
          %v1012 = vunpack.c.h.b16 %v917
          %v1013 = vunpack.c.l.b16 %v934
          %v1014 = vunpack.c.l.b16 %v918
          %v1015 = vunpack.c.h.b16 %v918
          %v1016 = vunpack.c.l.b16 %v935
          %v1017 = vunpack.c.l.b16 %v919
          %v1018 = vunpack.c.h.b16 %v919
          %v1019 = vunpack.c.l.b16 %v936
          %v1020 = vunpack.c.l.b16 %v920
          %v1021 = vunpack.c.h.b16 %v920
          %v1022 = vunpack.c.l.b16 %v937
          %v1023 = vpack.c.b16 %v972, %v972
          %v1024 = vpack.c.b16 %v973, %v973
          %v1025 = vpack.c.b16 %v974, %v974
          %v1026 = vpack.c.b16 %v975, %v975
          %v1027 = vpack.c.b16 %v976, %v976
          %v1028 = vpack.c.b16 %v977, %v977
          %v1029 = vpack.c.b16 %v978, %v978
          %v1030 = vpack.c.b16 %v979, %v979
          %v1031 = vpack.c.b16 %v980, %v980
          %v1032 = vpack.c.b16 %v981, %v981
          %v1033 = vpack.c.b16 %v982, %v982
          %v1034 = vpack.c.b16 %v983, %v983
          %v1035 = vpack.c.b16 %v984, %v984
          %v1036 = vpack.c.b16 %v985, %v985
          %v1037 = vpack.c.b16 %v986, %v986
          %v1038 = vpack.c.b16 %v987, %v987
          %v1039 = vpack.c.b16 %v988, %v988
          %v1040 = vpack.c.b16 %v989, %v989
          %v1041 = vpack.c.b16 %v990, %v990
          %v1042 = vpack.c.b16 %v991, %v991
          %v1043 = vpack.c.b16 %v992, %v992
          %v1044 = vpack.c.b16 %v993, %v993
          %v1045 = vpack.c.b16 %v994, %v994
          %v1046 = vpack.c.b16 %v995, %v995
          %v1047 = vpack.c.b16 %v996, %v996
          %v1048 = vpack.c.b16 %v997, %v997
          %v1049 = vpack.c.b16 %v998, %v998
          %v1050 = vpack.c.b16 %v999, %v999
          %v1051 = vpack.c.b16 %v1000, %v1000
          %v1052 = vpack.c.b16 %v1001, %v1001
          %v1053 = vpack.c.b16 %v1002, %v1002
          %v1054 = vpack.c.b16 %v1003, %v1003
          %v1055 = vpack.c.b16 %v1004, %v1004
          %v1056 = vpack.c.b16 %v1005, %v1005
          %v1057 = vpack.c.b16 %v1006, %v1006
          %v1058 = vpack.c.b16 %v1007, %v1007
          %v1059 = vpack.c.b16 %v1008, %v1008
          %v1060 = vpack.c.b16 %v1009, %v1009
          %v1061 = vpack.c.b16 %v1010, %v1010
          %v1062 = vpack.c.b16 %v1011, %v1011
          %v1063 = vpack.c.b16 %v1012, %v1012
          %v1064 = vpack.c.b16 %v1013, %v1013
          %v1065 = vpack.c.b16 %v1014, %v1014
          %v1066 = vpack.c.b16 %v1015, %v1015
          %v1067 = vpack.c.b16 %v1016, %v1016
          %v1068 = vpack.c.b16 %v1017, %v1017
          %v1069 = vpack.c.b16 %v1018, %v1018
          %v1070 = vpack.c.b16 %v1019, %v1019
          %v1071 = vpack.c.b16 %v1020, %v1020
          %v1072 = vpack.c.b16 %v1021, %v1021
          %v1073 = vpack.c.b16 %v1022, %v1022
          %vm1125 = vcmask 257024
          %1126 = vst.msk [vmem:[#allocation2] sm:$0xf] %vm1125, %v1023
          %1127 = vst.msk [vmem:[#allocation2 + $0x4] sm:$0xf] %vm1125, %v1024
          %vm1128 = vcmask 253952
          %1129 = vst.msk [vmem:[#allocation2 + $0x8] sm:$0x1] %vm1128, %v1025
          %1130 = vst.msk [vmem:[#allocation2 + $0xc] sm:$0xf] %vm1125, %v1026
          %1131 = vst.msk [vmem:[#allocation2 + $0x10] sm:$0xf] %vm1125, %v1027
          %1132 = vst.msk [vmem:[#allocation2 + $0x14] sm:$0x1] %vm1128, %v1028
          %1133 = vst.msk [vmem:[#allocation2 + $0x18] sm:$0xf] %vm1125, %v1029
          %1134 = vst.msk [vmem:[#allocation2 + $0x1c] sm:$0xf] %vm1125, %v1030
          %1135 = vst.msk [vmem:[#allocation2 + $0x20] sm:$0x1] %vm1128, %v1031
          %1136 = vst.msk [vmem:[#allocation2 + $0x24] sm:$0xf] %vm1125, %v1032
          %1137 = vst.msk [vmem:[#allocation2 + $0x28] sm:$0xf] %vm1125, %v1033
          %1138 = vst.msk [vmem:[#allocation2 + $0x2c] sm:$0x1] %vm1128, %v1034
          %1139 = vst.msk [vmem:[#allocation2 + $0x30] sm:$0xf] %vm1125, %v1035
          %1140 = vst.msk [vmem:[#allocation2 + $0x34] sm:$0xf] %vm1125, %v1036
          %1141 = vst.msk [vmem:[#allocation2 + $0x38] sm:$0x1] %vm1128, %v1037
          %1142 = vst.msk [vmem:[#allocation2 + $0x3c] sm:$0xf] %vm1125, %v1038
          %1143 = vst.msk [vmem:[#allocation2 + $0x40] sm:$0xf] %vm1125, %v1039
          %1144 = vst.msk [vmem:[#allocation2 + $0x44] sm:$0x1] %vm1128, %v1040
          %1145 = vst.msk [vmem:[#allocation2 + $0x48] sm:$0xf] %vm1125, %v1041
          %1146 = vst.msk [vmem:[#allocation2 + $0x4c] sm:$0xf] %vm1125, %v1042
          %1147 = vst.msk [vmem:[#allocation2 + $0x50] sm:$0x1] %vm1128, %v1043
          %1148 = vst.msk [vmem:[#allocation2 + $0x54] sm:$0xf] %vm1125, %v1044
          %1149 = vst.msk [vmem:[#allocation2 + $0x58] sm:$0xf] %vm1125, %v1045
          %1150 = vst.msk [vmem:[#allocation2 + $0x5c] sm:$0x1] %vm1128, %v1046
          %1151 = vst.msk [vmem:[#allocation2 + $0x60] sm:$0xf] %vm1125, %v1047
          %1152 = vst.msk [vmem:[#allocation2 + $0x64] sm:$0xf] %vm1125, %v1048
          %1153 = vst.msk [vmem:[#allocation2 + $0x68] sm:$0x1] %vm1128, %v1049
          %1154 = vst.msk [vmem:[#allocation2 + $0x6c] sm:$0xf] %vm1125, %v1050
          %1155 = vst.msk [vmem:[#allocation2 + $0x70] sm:$0xf] %vm1125, %v1051
          %1156 = vst.msk [vmem:[#allocation2 + $0x74] sm:$0x1] %vm1128, %v1052
          %1157 = vst.msk [vmem:[#allocation2 + $0x78] sm:$0xf] %vm1125, %v1053
          %1158 = vst.msk [vmem:[#allocation2 + $0x7c] sm:$0xf] %vm1125, %v1054
          %1159 = vst.msk [vmem:[#allocation2 + $0x80] sm:$0x1] %vm1128, %v1055
          %1160 = vst.msk [vmem:[#allocation2 + $0x84] sm:$0xf] %vm1125, %v1056
          %1161 = vst.msk [vmem:[#allocation2 + $0x88] sm:$0xf] %vm1125, %v1057
          %1162 = vst.msk [vmem:[#allocation2 + $0x8c] sm:$0x1] %vm1128, %v1058
          %1163 = vst.msk [vmem:[#allocation2 + $0x90] sm:$0xf] %vm1125, %v1059
          %1164 = vst.msk [vmem:[#allocation2 + $0x94] sm:$0xf] %vm1125, %v1060
          %1165 = vst.msk [vmem:[#allocation2 + $0x98] sm:$0x1] %vm1128, %v1061
          %1166 = vst.msk [vmem:[#allocation2 + $0x9c] sm:$0xf] %vm1125, %v1062
          %1167 = vst.msk [vmem:[#allocation2 + $0xa0] sm:$0xf] %vm1125, %v1063
          %1168 = vst.msk [vmem:[#allocation2 + $0xa4] sm:$0x1] %vm1128, %v1064
          %1169 = vst.msk [vmem:[#allocation2 + $0xa8] sm:$0xf] %vm1125, %v1065
          %1170 = vst.msk [vmem:[#allocation2 + $0xac] sm:$0xf] %vm1125, %v1066
          %1171 = vst.msk [vmem:[#allocation2 + $0xb0] sm:$0x1] %vm1128, %v1067
          %1172 = vst.msk [vmem:[#allocation2 + $0xb4] sm:$0xf] %vm1125, %v1068
          %1173 = vst.msk [vmem:[#allocation2 + $0xb8] sm:$0xf] %vm1125, %v1069
          %1174 = vst.msk [vmem:[#allocation2 + $0xbc] sm:$0x1] %vm1128, %v1070
          %1175 = vst.msk [vmem:[#allocation2 + $0xc0] sm:$0xf] %vm1125, %v1071
          %1176 = vst.msk [vmem:[#allocation2 + $0xc4] sm:$0xf] %vm1125, %v1072
          %1177 = vst.msk [vmem:[#allocation2 + $0xc8] sm:$0x1] %vm1128, %v1073
          %1178 = vst.msk [vmem:[#allocation2 + $0xcc] sm:$0xf] %vm1125, %v1023
          %1179 = vst.msk [vmem:[#allocation2 + $0xd0] sm:$0xf] %vm1125, %v1024
          %1180 = vst.msk [vmem:[#allocation2 + $0xd4] sm:$0x1] %vm1128, %v1025
        $region56: #{tpu_custom_call.1} parent=47 // pred_fallthru
          _
        %s1181 = smul.u32 %s29, 8
        %s1182 = smul.u32 %s1181, 3
        %s1183 = smul.addr %s1182, 4
        %s1184 = scalar_lea.vmem [#allocation2], %s1183
        %v1185 = vld [vmem:[%s1184] sm:$0xf]
        %v1186 = vld [vmem:[%s1184 + $0x4] sm:$0xf]
        %v1187 = vld [vmem:[%s1184 + $0x8] sm:$0x1]
        %v1188 = vld [vmem:[%s1184 + $0xc] sm:$0xf]
        %v1189 = vld [vmem:[%s1184 + $0x10] sm:$0xf]
        %v1190 = vld [vmem:[%s1184 + $0x14] sm:$0x1]
        %v1191 = vld [vmem:[%s1184 + $0x18] sm:$0xf]
        %v1192 = vld [vmem:[%s1184 + $0x1c] sm:$0xf]
        %v1193 = vld [vmem:[%s1184 + $0x20] sm:$0x1]
        %v1194 = vld [vmem:[%s1184 + $0x24] sm:$0xf]
        %v1195 = vld [vmem:[%s1184 + $0x28] sm:$0xf]
        %v1196 = vld [vmem:[%s1184 + $0x2c] sm:$0x1]
        %v1197 = vld [vmem:[%s1184 + $0x30] sm:$0xf]
        %v1198 = vld [vmem:[%s1184 + $0x34] sm:$0xf]
        %v1199 = vld [vmem:[%s1184 + $0x38] sm:$0x1]
        %v1200 = vld [vmem:[%s1184 + $0x3c] sm:$0xf]
        %v1201 = vld [vmem:[%s1184 + $0x40] sm:$0xf]
        %v1202 = vld [vmem:[%s1184 + $0x44] sm:$0x1]
        %v1203 = vld [vmem:[%s1184 + $0x48] sm:$0xf]
        %v1204 = vld [vmem:[%s1184 + $0x4c] sm:$0xf]
        %v1205 = vld [vmem:[%s1184 + $0x50] sm:$0x1]
        %v1206 = vld [vmem:[%s1184 + $0x54] sm:$0xf]
        %v1207 = vld [vmem:[%s1184 + $0x58] sm:$0xf]
        %v1208 = vld [vmem:[%s1184 + $0x5c] sm:$0x1]
        %vm1209 = vsmask.f32 3328
        %vm1210 = vsmask.f32 7440
        %vm1211 = vmor %vm1209, %vm1210
        %v1213 = vshrl.u32 %v1185, 16
        %v1215 = vrot.slane %v1213, 4
        %v1216 = vshll.u32 %v1185, 16
        %v1218 = vrot.slane %v1216, 5
        %v1219 = vor.u32 %v1215, %v1218
        %v1220 = vrot.slane %v1219, 4
        %v1222 = vshll.u32 %v1186, 16
        %v1224 = vrot.slane %v1222, 5
        %v1225 = vsel %vm1211, %v1220, %v1224
        %v1226 = vshrl.u32 %v1186, 16
        %v1228 = vrot.slane %v1226, 4
        %v1229 = vor.u32 %v1228, %v1224
        %v1230 = vrot.slane %v1229, 4
        %v1232 = vshll.u32 %v1187, 16
        %v1234 = vrot.slane %v1232, 5
        %v1235 = vsel %vm1211, %v1230, %v1234
        %v1237 = vshrl.u32 %v1188, 16
        %v1239 = vrot.slane %v1237, 4
        %v1240 = vshll.u32 %v1188, 16
        %v1242 = vrot.slane %v1240, 5
        %v1243 = vor.u32 %v1239, %v1242
        %v1244 = vrot.slane %v1243, 4
        %v1246 = vshll.u32 %v1189, 16
        %v1248 = vrot.slane %v1246, 5
        %v1249 = vsel %vm1211, %v1244, %v1248
        %v1250 = vshrl.u32 %v1189, 16
        %v1252 = vrot.slane %v1250, 4
        %v1253 = vor.u32 %v1252, %v1248
        %v1254 = vrot.slane %v1253, 4
        %v1256 = vshll.u32 %v1190, 16
        %v1258 = vrot.slane %v1256, 5
        %v1259 = vsel %vm1211, %v1254, %v1258
        %v1261 = vshrl.u32 %v1191, 16
        %v1263 = vrot.slane %v1261, 4
        %v1264 = vshll.u32 %v1191, 16
        %v1266 = vrot.slane %v1264, 5
        %v1267 = vor.u32 %v1263, %v1266
        %v1268 = vrot.slane %v1267, 4
        %v1270 = vshll.u32 %v1192, 16
        %v1272 = vrot.slane %v1270, 5
        %v1273 = vsel %vm1211, %v1268, %v1272
        %v1274 = vshrl.u32 %v1192, 16
        %v1276 = vrot.slane %v1274, 4
        %v1277 = vor.u32 %v1276, %v1272
        %v1278 = vrot.slane %v1277, 4
        %v1280 = vshll.u32 %v1193, 16
        %v1282 = vrot.slane %v1280, 5
        %v1283 = vsel %vm1211, %v1278, %v1282
        %v1285 = vshrl.u32 %v1194, 16
        %v1287 = vrot.slane %v1285, 4
        %v1288 = vshll.u32 %v1194, 16
        %v1290 = vrot.slane %v1288, 5
        %v1291 = vor.u32 %v1287, %v1290
        %v1292 = vrot.slane %v1291, 4
        %v1294 = vshll.u32 %v1195, 16
        %v1296 = vrot.slane %v1294, 5
        %v1297 = vsel %vm1211, %v1292, %v1296
        %v1298 = vshrl.u32 %v1195, 16
        %v1300 = vrot.slane %v1298, 4
        %v1301 = vor.u32 %v1300, %v1296
        %v1302 = vrot.slane %v1301, 4
        %v1304 = vshll.u32 %v1196, 16
        %v1306 = vrot.slane %v1304, 5
        %v1307 = vsel %vm1211, %v1302, %v1306
        %v1309 = vshrl.u32 %v1197, 16
        %v1311 = vrot.slane %v1309, 4
        %v1312 = vshll.u32 %v1197, 16
        %v1314 = vrot.slane %v1312, 5
        %v1315 = vor.u32 %v1311, %v1314
        %v1316 = vrot.slane %v1315, 4
        %v1318 = vshll.u32 %v1198, 16
        %v1320 = vrot.slane %v1318, 5
        %v1321 = vsel %vm1211, %v1316, %v1320
        %v1322 = vshrl.u32 %v1198, 16
        %v1324 = vrot.slane %v1322, 4
        %v1325 = vor.u32 %v1324, %v1320
        %v1326 = vrot.slane %v1325, 4
        %v1328 = vshll.u32 %v1199, 16
        %v1330 = vrot.slane %v1328, 5
        %v1331 = vsel %vm1211, %v1326, %v1330
        %v1333 = vshrl.u32 %v1200, 16
        %v1335 = vrot.slane %v1333, 4
        %v1336 = vshll.u32 %v1200, 16
        %v1338 = vrot.slane %v1336, 5
        %v1339 = vor.u32 %v1335, %v1338
        %v1340 = vrot.slane %v1339, 4
        %v1342 = vshll.u32 %v1201, 16
        %v1344 = vrot.slane %v1342, 5
        %v1345 = vsel %vm1211, %v1340, %v1344
        %v1346 = vshrl.u32 %v1201, 16
        %v1348 = vrot.slane %v1346, 4
        %v1349 = vor.u32 %v1348, %v1344
        %v1350 = vrot.slane %v1349, 4
        %v1352 = vshll.u32 %v1202, 16
        %v1354 = vrot.slane %v1352, 5
        %v1355 = vsel %vm1211, %v1350, %v1354
        %v1357 = vshrl.u32 %v1203, 16
        %v1359 = vrot.slane %v1357, 4
        %v1360 = vshll.u32 %v1203, 16
        %v1362 = vrot.slane %v1360, 5
        %v1363 = vor.u32 %v1359, %v1362
        %v1364 = vrot.slane %v1363, 4
        %v1366 = vshll.u32 %v1204, 16
        %v1368 = vrot.slane %v1366, 5
        %v1369 = vsel %vm1211, %v1364, %v1368
        %v1370 = vshrl.u32 %v1204, 16
        %v1372 = vrot.slane %v1370, 4
        %v1373 = vor.u32 %v1372, %v1368
        %v1374 = vrot.slane %v1373, 4
        %v1376 = vshll.u32 %v1205, 16
        %v1378 = vrot.slane %v1376, 5
        %v1379 = vsel %vm1211, %v1374, %v1378
        %v1381 = vshrl.u32 %v1206, 16
        %v1383 = vrot.slane %v1381, 4
        %v1384 = vshll.u32 %v1206, 16
        %v1386 = vrot.slane %v1384, 5
        %v1387 = vor.u32 %v1383, %v1386
        %v1388 = vrot.slane %v1387, 4
        %v1390 = vshll.u32 %v1207, 16
        %v1392 = vrot.slane %v1390, 5
        %v1393 = vsel %vm1211, %v1388, %v1392
        %v1394 = vshrl.u32 %v1207, 16
        %v1396 = vrot.slane %v1394, 4
        %v1397 = vor.u32 %v1396, %v1392
        %v1398 = vrot.slane %v1397, 4
        %v1400 = vshll.u32 %v1208, 16
        %v1402 = vrot.slane %v1400, 5
        %v1403 = vsel %vm1211, %v1398, %v1402
        %vm1428 = vcmask 1042432
        %vm1429 = vcmask 1046532
        %vm1430 = vmor %vm1428, %vm1429
        %v1431 = vrot.slane %v1185, 5
        %v1432 = vrot.slane %v1431, 4
        %v1433 = vrot.slane %v1186, 5
        %v1434 = vsel %vm1430, %v1432, %v1433
        %v1435 = vrot.slane %v1433, 4
        %v1436 = vrot.slane %v1187, 5
        %v1437 = vsel %vm1430, %v1435, %v1436
        %v1438 = vrot.slane %v1188, 5
        %v1439 = vrot.slane %v1438, 4
        %v1440 = vrot.slane %v1189, 5
        %v1441 = vsel %vm1430, %v1439, %v1440
        %v1442 = vrot.slane %v1440, 4
        %v1443 = vrot.slane %v1190, 5
        %v1444 = vsel %vm1430, %v1442, %v1443
        %v1445 = vrot.slane %v1191, 5
        %v1446 = vrot.slane %v1445, 4
        %v1447 = vrot.slane %v1192, 5
        %v1448 = vsel %vm1430, %v1446, %v1447
        %v1449 = vrot.slane %v1447, 4
        %v1450 = vrot.slane %v1193, 5
        %v1451 = vsel %vm1430, %v1449, %v1450
        %v1452 = vrot.slane %v1194, 5
        %v1453 = vrot.slane %v1452, 4
        %v1454 = vrot.slane %v1195, 5
        %v1455 = vsel %vm1430, %v1453, %v1454
        %v1456 = vrot.slane %v1454, 4
        %v1457 = vrot.slane %v1196, 5
        %v1458 = vsel %vm1430, %v1456, %v1457
        %v1459 = vrot.slane %v1197, 5
        %v1460 = vrot.slane %v1459, 4
        %v1461 = vrot.slane %v1198, 5
        %v1462 = vsel %vm1430, %v1460, %v1461
        %v1463 = vrot.slane %v1461, 4
        %v1464 = vrot.slane %v1199, 5
        %v1465 = vsel %vm1430, %v1463, %v1464
        %v1466 = vrot.slane %v1200, 5
        %v1467 = vrot.slane %v1466, 4
        %v1468 = vrot.slane %v1201, 5
        %v1469 = vsel %vm1430, %v1467, %v1468
        %v1470 = vrot.slane %v1468, 4
        %v1471 = vrot.slane %v1202, 5
        %v1472 = vsel %vm1430, %v1470, %v1471
        %v1473 = vrot.slane %v1203, 5
        %v1474 = vrot.slane %v1473, 4
        %v1475 = vrot.slane %v1204, 5
        %v1476 = vsel %vm1430, %v1474, %v1475
        %v1477 = vrot.slane %v1475, 4
        %v1478 = vrot.slane %v1205, 5
        %v1479 = vsel %vm1430, %v1477, %v1478
        %v1480 = vrot.slane %v1206, 5
        %v1481 = vrot.slane %v1480, 4
        %v1482 = vrot.slane %v1207, 5
        %v1483 = vsel %vm1430, %v1481, %v1482
        %v1484 = vrot.slane %v1482, 4
        %v1485 = vrot.slane %v1208, 5
        %v1486 = vsel %vm1430, %v1484, %v1485
        %s1487 = sadd.s32 %s1181, 1
        %s1488 = smul.u32 %s1487, 3
        %s1489 = smul.addr %s1488, 4
        %s1490 = scalar_lea.vmem [#allocation2], %s1489
        %v1491 = vld [vmem:[%s1490] sm:$0xf]
        %v1492 = vld [vmem:[%s1490 + $0x4] sm:$0xf]
        %v1493 = vld [vmem:[%s1490 + $0x8] sm:$0x1]
        %v1494 = vld [vmem:[%s1490 + $0xc] sm:$0xf]
        %v1495 = vld [vmem:[%s1490 + $0x10] sm:$0xf]
        %v1496 = vld [vmem:[%s1490 + $0x14] sm:$0x1]
        %v1497 = vld [vmem:[%s1490 + $0x18] sm:$0xf]
        %v1498 = vld [vmem:[%s1490 + $0x1c] sm:$0xf]
        %v1499 = vld [vmem:[%s1490 + $0x20] sm:$0x1]
        %v1500 = vld [vmem:[%s1490 + $0x24] sm:$0xf]
        %v1501 = vld [vmem:[%s1490 + $0x28] sm:$0xf]
        %v1502 = vld [vmem:[%s1490 + $0x2c] sm:$0x1]
        %v1503 = vld [vmem:[%s1490 + $0x30] sm:$0xf]
        %v1504 = vld [vmem:[%s1490 + $0x34] sm:$0xf]
        %v1505 = vld [vmem:[%s1490 + $0x38] sm:$0x1]
        %v1506 = vld [vmem:[%s1490 + $0x3c] sm:$0xf]
        %v1507 = vld [vmem:[%s1490 + $0x40] sm:$0xf]
        %v1508 = vld [vmem:[%s1490 + $0x44] sm:$0x1]
        %v1509 = vld [vmem:[%s1490 + $0x48] sm:$0xf]
        %v1510 = vld [vmem:[%s1490 + $0x4c] sm:$0xf]
        %v1511 = vld [vmem:[%s1490 + $0x50] sm:$0x1]
        %v1512 = vld [vmem:[%s1490 + $0x54] sm:$0xf]
        %v1513 = vld [vmem:[%s1490 + $0x58] sm:$0xf]
        %v1514 = vld [vmem:[%s1490 + $0x5c] sm:$0x1]
        %v1516 = vshrl.u32 %v1491, 16
        %v1518 = vrot.slane %v1516, 4
        %v1519 = vshll.u32 %v1491, 16
        %v1521 = vrot.slane %v1519, 5
        %v1522 = vor.u32 %v1518, %v1521
        %v1523 = vrot.slane %v1522, 4
        %v1525 = vshll.u32 %v1492, 16
        %v1527 = vrot.slane %v1525, 5
        %v1528 = vsel %vm1211, %v1523, %v1527
        %v1529 = vshrl.u32 %v1492, 16
        %v1531 = vrot.slane %v1529, 4
        %v1532 = vor.u32 %v1531, %v1527
        %v1533 = vrot.slane %v1532, 4
        %v1535 = vshll.u32 %v1493, 16
        %v1537 = vrot.slane %v1535, 5
        %v1538 = vsel %vm1211, %v1533, %v1537
        %v1540 = vshrl.u32 %v1494, 16
        %v1542 = vrot.slane %v1540, 4
        %v1543 = vshll.u32 %v1494, 16
        %v1545 = vrot.slane %v1543, 5
        %v1546 = vor.u32 %v1542, %v1545
        %v1547 = vrot.slane %v1546, 4
        %v1549 = vshll.u32 %v1495, 16
        %v1551 = vrot.slane %v1549, 5
        %v1552 = vsel %vm1211, %v1547, %v1551
        %v1553 = vshrl.u32 %v1495, 16
        %v1555 = vrot.slane %v1553, 4
        %v1556 = vor.u32 %v1555, %v1551
        %v1557 = vrot.slane %v1556, 4
        %v1559 = vshll.u32 %v1496, 16
        %v1561 = vrot.slane %v1559, 5
        %v1562 = vsel %vm1211, %v1557, %v1561
        %v1564 = vshrl.u32 %v1497, 16
        %v1566 = vrot.slane %v1564, 4
        %v1567 = vshll.u32 %v1497, 16
        %v1569 = vrot.slane %v1567, 5
        %v1570 = vor.u32 %v1566, %v1569
        %v1571 = vrot.slane %v1570, 4
        %v1573 = vshll.u32 %v1498, 16
        %v1575 = vrot.slane %v1573, 5
        %v1576 = vsel %vm1211, %v1571, %v1575
        %v1577 = vshrl.u32 %v1498, 16
        %v1579 = vrot.slane %v1577, 4
        %v1580 = vor.u32 %v1579, %v1575
        %v1581 = vrot.slane %v1580, 4
        %v1583 = vshll.u32 %v1499, 16
        %v1585 = vrot.slane %v1583, 5
        %v1586 = vsel %vm1211, %v1581, %v1585
        %v1588 = vshrl.u32 %v1500, 16
        %v1590 = vrot.slane %v1588, 4
        %v1591 = vshll.u32 %v1500, 16
        %v1593 = vrot.slane %v1591, 5
        %v1594 = vor.u32 %v1590, %v1593
        %v1595 = vrot.slane %v1594, 4
        %v1597 = vshll.u32 %v1501, 16
        %v1599 = vrot.slane %v1597, 5
        %v1600 = vsel %vm1211, %v1595, %v1599
        %v1601 = vshrl.u32 %v1501, 16
        %v1603 = vrot.slane %v1601, 4
        %v1604 = vor.u32 %v1603, %v1599
        %v1605 = vrot.slane %v1604, 4
        %v1607 = vshll.u32 %v1502, 16
        %v1609 = vrot.slane %v1607, 5
        %v1610 = vsel %vm1211, %v1605, %v1609
        %v1612 = vshrl.u32 %v1503, 16
        %v1614 = vrot.slane %v1612, 4
        %v1615 = vshll.u32 %v1503, 16
        %v1617 = vrot.slane %v1615, 5
        %v1618 = vor.u32 %v1614, %v1617
        %v1619 = vrot.slane %v1618, 4
        %v1621 = vshll.u32 %v1504, 16
        %v1623 = vrot.slane %v1621, 5
        %v1624 = vsel %vm1211, %v1619, %v1623
        %v1625 = vshrl.u32 %v1504, 16
        %v1627 = vrot.slane %v1625, 4
        %v1628 = vor.u32 %v1627, %v1623
        %v1629 = vrot.slane %v1628, 4
        %v1631 = vshll.u32 %v1505, 16
        %v1633 = vrot.slane %v1631, 5
        %v1634 = vsel %vm1211, %v1629, %v1633
        %v1636 = vshrl.u32 %v1506, 16
        %v1638 = vrot.slane %v1636, 4
        %v1639 = vshll.u32 %v1506, 16
        %v1641 = vrot.slane %v1639, 5
        %v1642 = vor.u32 %v1638, %v1641
        %v1643 = vrot.slane %v1642, 4
        %v1645 = vshll.u32 %v1507, 16
        %v1647 = vrot.slane %v1645, 5
        %v1648 = vsel %vm1211, %v1643, %v1647
        %v1649 = vshrl.u32 %v1507, 16
        %v1651 = vrot.slane %v1649, 4
        %v1652 = vor.u32 %v1651, %v1647
        %v1653 = vrot.slane %v1652, 4
        %v1655 = vshll.u32 %v1508, 16
        %v1657 = vrot.slane %v1655, 5
        %v1658 = vsel %vm1211, %v1653, %v1657
        %v1660 = vshrl.u32 %v1509, 16
        %v1662 = vrot.slane %v1660, 4
        %v1663 = vshll.u32 %v1509, 16
        %v1665 = vrot.slane %v1663, 5
        %v1666 = vor.u32 %v1662, %v1665
        %v1667 = vrot.slane %v1666, 4
        %v1669 = vshll.u32 %v1510, 16
        %v1671 = vrot.slane %v1669, 5
        %v1672 = vsel %vm1211, %v1667, %v1671
        %v1673 = vshrl.u32 %v1510, 16
        %v1675 = vrot.slane %v1673, 4
        %v1676 = vor.u32 %v1675, %v1671
        %v1677 = vrot.slane %v1676, 4
        %v1679 = vshll.u32 %v1511, 16
        %v1681 = vrot.slane %v1679, 5
        %v1682 = vsel %vm1211, %v1677, %v1681
        %v1684 = vshrl.u32 %v1512, 16
        %v1686 = vrot.slane %v1684, 4
        %v1687 = vshll.u32 %v1512, 16
        %v1689 = vrot.slane %v1687, 5
        %v1690 = vor.u32 %v1686, %v1689
        %v1691 = vrot.slane %v1690, 4
        %v1693 = vshll.u32 %v1513, 16
        %v1695 = vrot.slane %v1693, 5
        %v1696 = vsel %vm1211, %v1691, %v1695
        %v1697 = vshrl.u32 %v1513, 16
        %v1699 = vrot.slane %v1697, 4
        %v1700 = vor.u32 %v1699, %v1695
        %v1701 = vrot.slane %v1700, 4
        %v1703 = vshll.u32 %v1514, 16
        %v1705 = vrot.slane %v1703, 5
        %v1706 = vsel %vm1211, %v1701, %v1705
        %v1731 = vrot.slane %v1491, 5
        %v1732 = vrot.slane %v1731, 4
        %v1733 = vrot.slane %v1492, 5
        %v1734 = vsel %vm1430, %v1732, %v1733
        %v1735 = vrot.slane %v1733, 4
        %v1736 = vrot.slane %v1493, 5
        %v1737 = vsel %vm1430, %v1735, %v1736
        %v1738 = vrot.slane %v1494, 5
        %v1739 = vrot.slane %v1738, 4
        %v1740 = vrot.slane %v1495, 5
        %v1741 = vsel %vm1430, %v1739, %v1740
        %v1742 = vrot.slane %v1740, 4
        %v1743 = vrot.slane %v1496, 5
        %v1744 = vsel %vm1430, %v1742, %v1743
        %v1745 = vrot.slane %v1497, 5
        %v1746 = vrot.slane %v1745, 4
        %v1747 = vrot.slane %v1498, 5
        %v1748 = vsel %vm1430, %v1746, %v1747
        %v1749 = vrot.slane %v1747, 4
        %v1750 = vrot.slane %v1499, 5
        %v1751 = vsel %vm1430, %v1749, %v1750
        %v1752 = vrot.slane %v1500, 5
        %v1753 = vrot.slane %v1752, 4
        %v1754 = vrot.slane %v1501, 5
        %v1755 = vsel %vm1430, %v1753, %v1754
        %v1756 = vrot.slane %v1754, 4
        %v1757 = vrot.slane %v1502, 5
        %v1758 = vsel %vm1430, %v1756, %v1757
        %v1759 = vrot.slane %v1503, 5
        %v1760 = vrot.slane %v1759, 4
        %v1761 = vrot.slane %v1504, 5
        %v1762 = vsel %vm1430, %v1760, %v1761
        %v1763 = vrot.slane %v1761, 4
        %v1764 = vrot.slane %v1505, 5
        %v1765 = vsel %vm1430, %v1763, %v1764
        %v1766 = vrot.slane %v1506, 5
        %v1767 = vrot.slane %v1766, 4
        %v1768 = vrot.slane %v1507, 5
        %v1769 = vsel %vm1430, %v1767, %v1768
        %v1770 = vrot.slane %v1768, 4
        %v1771 = vrot.slane %v1508, 5
        %v1772 = vsel %vm1430, %v1770, %v1771
        %v1773 = vrot.slane %v1509, 5
        %v1774 = vrot.slane %v1773, 4
        %v1775 = vrot.slane %v1510, 5
        %v1776 = vsel %vm1430, %v1774, %v1775
        %v1777 = vrot.slane %v1775, 4
        %v1778 = vrot.slane %v1511, 5
        %v1779 = vsel %vm1430, %v1777, %v1778
        %v1780 = vrot.slane %v1512, 5
        %v1781 = vrot.slane %v1780, 4
        %v1782 = vrot.slane %v1513, 5
        %v1783 = vsel %vm1430, %v1781, %v1782
        %v1784 = vrot.slane %v1782, 4
        %v1785 = vrot.slane %v1514, 5
        %v1786 = vsel %vm1430, %v1784, %v1785
        %s1787 = sadd.s32 %s1181, 2
        %s1788 = smul.u32 %s1787, 3
        %s1789 = smul.addr %s1788, 4
        %s1790 = scalar_lea.vmem [#allocation2], %s1789
        %v1791 = vld [vmem:[%s1790] sm:$0xf]
        %v1792 = vld [vmem:[%s1790 + $0x4] sm:$0xf]
        %v1793 = vld [vmem:[%s1790 + $0x8] sm:$0x1]
        %v1794 = vld [vmem:[%s1790 + $0xc] sm:$0xf]
        %v1795 = vld [vmem:[%s1790 + $0x10] sm:$0xf]
        %v1796 = vld [vmem:[%s1790 + $0x14] sm:$0x1]
        %v1797 = vld [vmem:[%s1790 + $0x18] sm:$0xf]
        %v1798 = vld [vmem:[%s1790 + $0x1c] sm:$0xf]
        %v1799 = vld [vmem:[%s1790 + $0x20] sm:$0x1]
        %v1800 = vld [vmem:[%s1790 + $0x24] sm:$0xf]
        %v1801 = vld [vmem:[%s1790 + $0x28] sm:$0xf]
        %v1802 = vld [vmem:[%s1790 + $0x2c] sm:$0x1]
        %v1803 = vld [vmem:[%s1790 + $0x30] sm:$0xf]
        %v1804 = vld [vmem:[%s1790 + $0x34] sm:$0xf]
        %v1805 = vld [vmem:[%s1790 + $0x38] sm:$0x1]
        %v1806 = vld [vmem:[%s1790 + $0x3c] sm:$0xf]
        %v1807 = vld [vmem:[%s1790 + $0x40] sm:$0xf]
        %v1808 = vld [vmem:[%s1790 + $0x44] sm:$0x1]
        %v1809 = vld [vmem:[%s1790 + $0x48] sm:$0xf]
        %v1810 = vld [vmem:[%s1790 + $0x4c] sm:$0xf]
        %v1811 = vld [vmem:[%s1790 + $0x50] sm:$0x1]
        %v1812 = vld [vmem:[%s1790 + $0x54] sm:$0xf]
        %v1813 = vld [vmem:[%s1790 + $0x58] sm:$0xf]
        %v1814 = vld [vmem:[%s1790 + $0x5c] sm:$0x1]
        %v1816 = vshrl.u32 %v1791, 16
        %v1818 = vrot.slane %v1816, 4
        %v1819 = vshll.u32 %v1791, 16
        %v1821 = vrot.slane %v1819, 5
        %v1822 = vor.u32 %v1818, %v1821
        %v1823 = vrot.slane %v1822, 4
        %v1825 = vshll.u32 %v1792, 16
        %v1827 = vrot.slane %v1825, 5
        %v1828 = vsel %vm1211, %v1823, %v1827
        %v1829 = vshrl.u32 %v1792, 16
        %v1831 = vrot.slane %v1829, 4
        %v1832 = vor.u32 %v1831, %v1827
        %v1833 = vrot.slane %v1832, 4
        %v1835 = vshll.u32 %v1793, 16
        %v1837 = vrot.slane %v1835, 5
        %v1838 = vsel %vm1211, %v1833, %v1837
        %v1840 = vshrl.u32 %v1794, 16
        %v1842 = vrot.slane %v1840, 4
        %v1843 = vshll.u32 %v1794, 16
        %v1845 = vrot.slane %v1843, 5
        %v1846 = vor.u32 %v1842, %v1845
        %v1847 = vrot.slane %v1846, 4
        %v1849 = vshll.u32 %v1795, 16
        %v1851 = vrot.slane %v1849, 5
        %v1852 = vsel %vm1211, %v1847, %v1851
        %v1853 = vshrl.u32 %v1795, 16
        %v1855 = vrot.slane %v1853, 4
        %v1856 = vor.u32 %v1855, %v1851
        %v1857 = vrot.slane %v1856, 4
        %v1859 = vshll.u32 %v1796, 16
        %v1861 = vrot.slane %v1859, 5
        %v1862 = vsel %vm1211, %v1857, %v1861
        %v1864 = vshrl.u32 %v1797, 16
        %v1866 = vrot.slane %v1864, 4
        %v1867 = vshll.u32 %v1797, 16
        %v1869 = vrot.slane %v1867, 5
        %v1870 = vor.u32 %v1866, %v1869
        %v1871 = vrot.slane %v1870, 4
        %v1873 = vshll.u32 %v1798, 16
        %v1875 = vrot.slane %v1873, 5
        %v1876 = vsel %vm1211, %v1871, %v1875
        %v1877 = vshrl.u32 %v1798, 16
        %v1879 = vrot.slane %v1877, 4
        %v1880 = vor.u32 %v1879, %v1875
        %v1881 = vrot.slane %v1880, 4
        %v1883 = vshll.u32 %v1799, 16
        %v1885 = vrot.slane %v1883, 5
        %v1886 = vsel %vm1211, %v1881, %v1885
        %v1888 = vshrl.u32 %v1800, 16
        %v1890 = vrot.slane %v1888, 4
        %v1891 = vshll.u32 %v1800, 16
        %v1893 = vrot.slane %v1891, 5
        %v1894 = vor.u32 %v1890, %v1893
        %v1895 = vrot.slane %v1894, 4
        %v1897 = vshll.u32 %v1801, 16
        %v1899 = vrot.slane %v1897, 5
        %v1900 = vsel %vm1211, %v1895, %v1899
        %v1901 = vshrl.u32 %v1801, 16
        %v1903 = vrot.slane %v1901, 4
        %v1904 = vor.u32 %v1903, %v1899
        %v1905 = vrot.slane %v1904, 4
        %v1907 = vshll.u32 %v1802, 16
        %v1909 = vrot.slane %v1907, 5
        %v1910 = vsel %vm1211, %v1905, %v1909
        %v1912 = vshrl.u32 %v1803, 16
        %v1914 = vrot.slane %v1912, 4
        %v1915 = vshll.u32 %v1803, 16
        %v1917 = vrot.slane %v1915, 5
        %v1918 = vor.u32 %v1914, %v1917
        %v1919 = vrot.slane %v1918, 4
        %v1921 = vshll.u32 %v1804, 16
        %v1923 = vrot.slane %v1921, 5
        %v1924 = vsel %vm1211, %v1919, %v1923
        %v1925 = vshrl.u32 %v1804, 16
        %v1927 = vrot.slane %v1925, 4
        %v1928 = vor.u32 %v1927, %v1923
        %v1929 = vrot.slane %v1928, 4
        %v1931 = vshll.u32 %v1805, 16
        %v1933 = vrot.slane %v1931, 5
        %v1934 = vsel %vm1211, %v1929, %v1933
        %v1936 = vshrl.u32 %v1806, 16
        %v1938 = vrot.slane %v1936, 4
        %v1939 = vshll.u32 %v1806, 16
        %v1941 = vrot.slane %v1939, 5
        %v1942 = vor.u32 %v1938, %v1941
        %v1943 = vrot.slane %v1942, 4
        %v1945 = vshll.u32 %v1807, 16
        %v1947 = vrot.slane %v1945, 5
        %v1948 = vsel %vm1211, %v1943, %v1947
        %v1949 = vshrl.u32 %v1807, 16
        %v1951 = vrot.slane %v1949, 4
        %v1952 = vor.u32 %v1951, %v1947
        %v1953 = vrot.slane %v1952, 4
        %v1955 = vshll.u32 %v1808, 16
        %v1957 = vrot.slane %v1955, 5
        %v1958 = vsel %vm1211, %v1953, %v1957
        %v1960 = vshrl.u32 %v1809, 16
        %v1962 = vrot.slane %v1960, 4
        %v1963 = vshll.u32 %v1809, 16
        %v1965 = vrot.slane %v1963, 5
        %v1966 = vor.u32 %v1962, %v1965
        %v1967 = vrot.slane %v1966, 4
        %v1969 = vshll.u32 %v1810, 16
        %v1971 = vrot.slane %v1969, 5
        %v1972 = vsel %vm1211, %v1967, %v1971
        %v1973 = vshrl.u32 %v1810, 16
        %v1975 = vrot.slane %v1973, 4
        %v1976 = vor.u32 %v1975, %v1971
        %v1977 = vrot.slane %v1976, 4
        %v1979 = vshll.u32 %v1811, 16
        %v1981 = vrot.slane %v1979, 5
        %v1982 = vsel %vm1211, %v1977, %v1981
        %v1984 = vshrl.u32 %v1812, 16
        %v1986 = vrot.slane %v1984, 4
        %v1987 = vshll.u32 %v1812, 16
        %v1989 = vrot.slane %v1987, 5
        %v1990 = vor.u32 %v1986, %v1989
        %v1991 = vrot.slane %v1990, 4
        %v1993 = vshll.u32 %v1813, 16
        %v1995 = vrot.slane %v1993, 5
        %v1996 = vsel %vm1211, %v1991, %v1995
        %v1997 = vshrl.u32 %v1813, 16
        %v1999 = vrot.slane %v1997, 4
        %v2000 = vor.u32 %v1999, %v1995
        %v2001 = vrot.slane %v2000, 4
        %v2003 = vshll.u32 %v1814, 16
        %v2005 = vrot.slane %v2003, 5
        %v2006 = vsel %vm1211, %v2001, %v2005
        %v2031 = vrot.slane %v1791, 5
        %v2032 = vrot.slane %v2031, 4
        %v2033 = vrot.slane %v1792, 5
        %v2034 = vsel %vm1430, %v2032, %v2033
        %v2035 = vrot.slane %v2033, 4
        %v2036 = vrot.slane %v1793, 5
        %v2037 = vsel %vm1430, %v2035, %v2036
        %v2038 = vrot.slane %v1794, 5
        %v2039 = vrot.slane %v2038, 4
        %v2040 = vrot.slane %v1795, 5
        %v2041 = vsel %vm1430, %v2039, %v2040
        %v2042 = vrot.slane %v2040, 4
        %v2043 = vrot.slane %v1796, 5
        %v2044 = vsel %vm1430, %v2042, %v2043
        %v2045 = vrot.slane %v1797, 5
        %v2046 = vrot.slane %v2045, 4
        %v2047 = vrot.slane %v1798, 5
        %v2048 = vsel %vm1430, %v2046, %v2047
        %v2049 = vrot.slane %v2047, 4
        %v2050 = vrot.slane %v1799, 5
        %v2051 = vsel %vm1430, %v2049, %v2050
        %v2052 = vrot.slane %v1800, 5
        %v2053 = vrot.slane %v2052, 4
        %v2054 = vrot.slane %v1801, 5
        %v2055 = vsel %vm1430, %v2053, %v2054
        %v2056 = vrot.slane %v2054, 4
        %v2057 = vrot.slane %v1802, 5
        %v2058 = vsel %vm1430, %v2056, %v2057
        %v2059 = vrot.slane %v1803, 5
        %v2060 = vrot.slane %v2059, 4
        %v2061 = vrot.slane %v1804, 5
        %v2062 = vsel %vm1430, %v2060, %v2061
        %v2063 = vrot.slane %v2061, 4
        %v2064 = vrot.slane %v1805, 5
        %v2065 = vsel %vm1430, %v2063, %v2064
        %v2066 = vrot.slane %v1806, 5
        %v2067 = vrot.slane %v2066, 4
        %v2068 = vrot.slane %v1807, 5
        %v2069 = vsel %vm1430, %v2067, %v2068
        %v2070 = vrot.slane %v2068, 4
        %v2071 = vrot.slane %v1808, 5
        %v2072 = vsel %vm1430, %v2070, %v2071
        %v2073 = vrot.slane %v1809, 5
        %v2074 = vrot.slane %v2073, 4
        %v2075 = vrot.slane %v1810, 5
        %v2076 = vsel %vm1430, %v2074, %v2075
        %v2077 = vrot.slane %v2075, 4
        %v2078 = vrot.slane %v1811, 5
        %v2079 = vsel %vm1430, %v2077, %v2078
        %v2080 = vrot.slane %v1812, 5
        %v2081 = vrot.slane %v2080, 4
        %v2082 = vrot.slane %v1813, 5
        %v2083 = vsel %vm1430, %v2081, %v2082
        %v2084 = vrot.slane %v2082, 4
        %v2085 = vrot.slane %v1814, 5
        %v2086 = vsel %vm1430, %v2084, %v2085
        %v2087 = vunpack.c.l.b16 %v1185
        %v2088 = vunpack.c.l.b16 %v1186
        %v2089 = vunpack.c.l.b16 %v1188
        %v2090 = vunpack.c.l.b16 %v1189
        %v2091 = vunpack.c.l.b16 %v1191
        %v2092 = vunpack.c.l.b16 %v1192
        %v2093 = vunpack.c.l.b16 %v1194
        %v2094 = vunpack.c.l.b16 %v1195
        %v2095 = vunpack.c.l.b16 %v1197
        %v2096 = vunpack.c.l.b16 %v1198
        %v2097 = vunpack.c.l.b16 %v1200
        %v2098 = vunpack.c.l.b16 %v1201
        %v2099 = vunpack.c.l.b16 %v1203
        %v2100 = vunpack.c.l.b16 %v1204
        %v2101 = vunpack.c.l.b16 %v1206
        %v2102 = vunpack.c.l.b16 %v1207
        %v2103 = vpack.c.b16 %v2088, %v2087
        %v2104 = vpack.c.b16 %v2090, %v2089
        %v2105 = vpack.c.b16 %v2092, %v2091
        %v2106 = vpack.c.b16 %v2094, %v2093
        %v2107 = vpack.c.b16 %v2096, %v2095
        %v2108 = vpack.c.b16 %v2098, %v2097
        %v2109 = vpack.c.b16 %v2100, %v2099
        %v2110 = vpack.c.b16 %v2102, %v2101
        %v2111 = vunpack.c.l.b16 %v1225
        %v2112 = vunpack.c.l.b16 %v1235
        %v2113 = vunpack.c.l.b16 %v1249
        %v2114 = vunpack.c.l.b16 %v1259
        %v2115 = vunpack.c.l.b16 %v1273
        %v2116 = vunpack.c.l.b16 %v1283
        %v2117 = vunpack.c.l.b16 %v1297
        %v2118 = vunpack.c.l.b16 %v1307
        %v2119 = vunpack.c.l.b16 %v1321
        %v2120 = vunpack.c.l.b16 %v1331
        %v2121 = vunpack.c.l.b16 %v1345
        %v2122 = vunpack.c.l.b16 %v1355
        %v2123 = vunpack.c.l.b16 %v1369
        %v2124 = vunpack.c.l.b16 %v1379
        %v2125 = vunpack.c.l.b16 %v1393
        %v2126 = vunpack.c.l.b16 %v1403
        %v2127 = vpack.c.b16 %v2112, %v2111
        %v2128 = vpack.c.b16 %v2114, %v2113
        %v2129 = vpack.c.b16 %v2116, %v2115
        %v2130 = vpack.c.b16 %v2118, %v2117
        %v2131 = vpack.c.b16 %v2120, %v2119
        %v2132 = vpack.c.b16 %v2122, %v2121
        %v2133 = vpack.c.b16 %v2124, %v2123
        %v2134 = vpack.c.b16 %v2126, %v2125
        %2135 = vrot.lane.b32.xlu0 %v2127, 32
        %v2136 = vpop.permute.xlu0 %2135
        %2137 = vrot.lane.b32.xlu0 %v2128, 32
        %v2138 = vpop.permute.xlu0 %2137
        %2139 = vrot.lane.b32.xlu0 %v2129, 32
        %v2140 = vpop.permute.xlu0 %2139
        %2141 = vrot.lane.b32.xlu0 %v2130, 32
        %v2142 = vpop.permute.xlu0 %2141
        %2143 = vrot.lane.b32.xlu0 %v2131, 32
        %v2144 = vpop.permute.xlu0 %2143
        %2145 = vrot.lane.b32.xlu0 %v2132, 32
        %v2146 = vpop.permute.xlu0 %2145
        %2147 = vrot.lane.b32.xlu0 %v2133, 32
        %v2148 = vpop.permute.xlu0 %2147
        %2149 = vrot.lane.b32.xlu0 %v2134, 32
        %v2150 = vpop.permute.xlu0 %2149
        %v2151 = vunpack.c.l.b16 %v1434
        %v2152 = vunpack.c.l.b16 %v1437
        %v2153 = vunpack.c.l.b16 %v1441
        %v2154 = vunpack.c.l.b16 %v1444
        %v2155 = vunpack.c.l.b16 %v1448
        %v2156 = vunpack.c.l.b16 %v1451
        %v2157 = vunpack.c.l.b16 %v1455
        %v2158 = vunpack.c.l.b16 %v1458
        %v2159 = vunpack.c.l.b16 %v1462
        %v2160 = vunpack.c.l.b16 %v1465
        %v2161 = vunpack.c.l.b16 %v1469
        %v2162 = vunpack.c.l.b16 %v1472
        %v2163 = vunpack.c.l.b16 %v1476
        %v2164 = vunpack.c.l.b16 %v1479
        %v2165 = vunpack.c.l.b16 %v1483
        %v2166 = vunpack.c.l.b16 %v1486
        %v2167 = vpack.c.b16 %v2152, %v2151
        %v2168 = vpack.c.b16 %v2154, %v2153
        %v2169 = vpack.c.b16 %v2156, %v2155
        %v2170 = vpack.c.b16 %v2158, %v2157
        %v2171 = vpack.c.b16 %v2160, %v2159
        %v2172 = vpack.c.b16 %v2162, %v2161
        %v2173 = vpack.c.b16 %v2164, %v2163
        %v2174 = vpack.c.b16 %v2166, %v2165
        %2175 = vrot.lane.b32.xlu0 %v2167, 64
        %v2176 = vpop.permute.xlu0 %2175
        %2177 = vrot.lane.b32.xlu0 %v2168, 64
        %v2178 = vpop.permute.xlu0 %2177
        %2179 = vrot.lane.b32.xlu0 %v2169, 64
        %v2180 = vpop.permute.xlu0 %2179
        %2181 = vrot.lane.b32.xlu0 %v2170, 64
        %v2182 = vpop.permute.xlu0 %2181
        %2183 = vrot.lane.b32.xlu0 %v2171, 64
        %v2184 = vpop.permute.xlu0 %2183
        %2185 = vrot.lane.b32.xlu0 %v2172, 64
        %v2186 = vpop.permute.xlu0 %2185
        %2187 = vrot.lane.b32.xlu0 %v2173, 64
        %v2188 = vpop.permute.xlu0 %2187
        %2189 = vrot.lane.b32.xlu0 %v2174, 64
        %v2190 = vpop.permute.xlu0 %2189
        %v2191 = vunpack.c.l.b16 %v1491
        %v2192 = vunpack.c.l.b16 %v1492
        %v2193 = vunpack.c.l.b16 %v1494
        %v2194 = vunpack.c.l.b16 %v1495
        %v2195 = vunpack.c.l.b16 %v1497
        %v2196 = vunpack.c.l.b16 %v1498
        %v2197 = vunpack.c.l.b16 %v1500
        %v2198 = vunpack.c.l.b16 %v1501
        %v2199 = vunpack.c.l.b16 %v1503
        %v2200 = vunpack.c.l.b16 %v1504
        %v2201 = vunpack.c.l.b16 %v1506
        %v2202 = vunpack.c.l.b16 %v1507
        %v2203 = vunpack.c.l.b16 %v1509
        %v2204 = vunpack.c.l.b16 %v1510
        %v2205 = vunpack.c.l.b16 %v1512
        %v2206 = vunpack.c.l.b16 %v1513
        %v2207 = vpack.c.b16 %v2192, %v2191
        %v2208 = vpack.c.b16 %v2194, %v2193
        %v2209 = vpack.c.b16 %v2196, %v2195
        %v2210 = vpack.c.b16 %v2198, %v2197
        %v2211 = vpack.c.b16 %v2200, %v2199
        %v2212 = vpack.c.b16 %v2202, %v2201
        %v2213 = vpack.c.b16 %v2204, %v2203
        %v2214 = vpack.c.b16 %v2206, %v2205
        %2215 = vrot.lane.b32.xlu0 %v2207, 96
        %v2216 = vpop.permute.xlu0 %2215
        %2217 = vrot.lane.b32.xlu0 %v2208, 96
        %v2218 = vpop.permute.xlu0 %2217
        %2219 = vrot.lane.b32.xlu0 %v2209, 96
        %v2220 = vpop.permute.xlu0 %2219
        %2221 = vrot.lane.b32.xlu0 %v2210, 96
        %v2222 = vpop.permute.xlu0 %2221
        %2223 = vrot.lane.b32.xlu0 %v2211, 96
        %v2224 = vpop.permute.xlu0 %2223
        %2225 = vrot.lane.b32.xlu0 %v2212, 96
        %v2226 = vpop.permute.xlu0 %2225
        %2227 = vrot.lane.b32.xlu0 %v2213, 96
        %v2228 = vpop.permute.xlu0 %2227
        %2229 = vrot.lane.b32.xlu0 %v2214, 96
        %v2230 = vpop.permute.xlu0 %2229
        %v2231 = vunpack.c.l.b16 %v1528
        %v2232 = vunpack.c.l.b16 %v1538
        %v2233 = vunpack.c.l.b16 %v1552
        %v2234 = vunpack.c.l.b16 %v1562
        %v2235 = vunpack.c.l.b16 %v1576
        %v2236 = vunpack.c.l.b16 %v1586
        %v2237 = vunpack.c.l.b16 %v1600
        %v2238 = vunpack.c.l.b16 %v1610
        %v2239 = vunpack.c.l.b16 %v1624
        %v2240 = vunpack.c.l.b16 %v1634
        %v2241 = vunpack.c.l.b16 %v1648
        %v2242 = vunpack.c.l.b16 %v1658
        %v2243 = vunpack.c.l.b16 %v1672
        %v2244 = vunpack.c.l.b16 %v1682
        %v2245 = vunpack.c.l.b16 %v1696
        %v2246 = vunpack.c.l.b16 %v1706
        %v2247 = vpack.c.b16 %v2232, %v2231
        %v2248 = vpack.c.b16 %v2234, %v2233
        %v2249 = vpack.c.b16 %v2236, %v2235
        %v2250 = vpack.c.b16 %v2238, %v2237
        %v2251 = vpack.c.b16 %v2240, %v2239
        %v2252 = vpack.c.b16 %v2242, %v2241
        %v2253 = vpack.c.b16 %v2244, %v2243
        %v2254 = vpack.c.b16 %v2246, %v2245
        %v2255 = vunpack.c.l.b16 %v1734
        %v2256 = vunpack.c.l.b16 %v1737
        %v2257 = vunpack.c.l.b16 %v1741
        %v2258 = vunpack.c.l.b16 %v1744
        %v2259 = vunpack.c.l.b16 %v1748
        %v2260 = vunpack.c.l.b16 %v1751
        %v2261 = vunpack.c.l.b16 %v1755
        %v2262 = vunpack.c.l.b16 %v1758
        %v2263 = vunpack.c.l.b16 %v1762
        %v2264 = vunpack.c.l.b16 %v1765
        %v2265 = vunpack.c.l.b16 %v1769
        %v2266 = vunpack.c.l.b16 %v1772
        %v2267 = vunpack.c.l.b16 %v1776
        %v2268 = vunpack.c.l.b16 %v1779
        %v2269 = vunpack.c.l.b16 %v1783
        %v2270 = vunpack.c.l.b16 %v1786
        %v2271 = vpack.c.b16 %v2256, %v2255
        %v2272 = vpack.c.b16 %v2258, %v2257
        %v2273 = vpack.c.b16 %v2260, %v2259
        %v2274 = vpack.c.b16 %v2262, %v2261
        %v2275 = vpack.c.b16 %v2264, %v2263
        %v2276 = vpack.c.b16 %v2266, %v2265
        %v2277 = vpack.c.b16 %v2268, %v2267
        %v2278 = vpack.c.b16 %v2270, %v2269
        %2279 = vrot.lane.b32.xlu0 %v2271, 32
        %v2280 = vpop.permute.xlu0 %2279
        %2281 = vrot.lane.b32.xlu0 %v2272, 32
        %v2282 = vpop.permute.xlu0 %2281
        %2283 = vrot.lane.b32.xlu0 %v2273, 32
        %v2284 = vpop.permute.xlu0 %2283
        %2285 = vrot.lane.b32.xlu0 %v2274, 32
        %v2286 = vpop.permute.xlu0 %2285
        %2287 = vrot.lane.b32.xlu0 %v2275, 32
        %v2288 = vpop.permute.xlu0 %2287
        %2289 = vrot.lane.b32.xlu0 %v2276, 32
        %v2290 = vpop.permute.xlu0 %2289
        %2291 = vrot.lane.b32.xlu0 %v2277, 32
        %v2292 = vpop.permute.xlu0 %2291
        %2293 = vrot.lane.b32.xlu0 %v2278, 32
        %v2294 = vpop.permute.xlu0 %2293
        %v2295 = vunpack.c.l.b16 %v1791
        %v2296 = vunpack.c.l.b16 %v1792
        %v2297 = vunpack.c.l.b16 %v1794
        %v2298 = vunpack.c.l.b16 %v1795
        %v2299 = vunpack.c.l.b16 %v1797
        %v2300 = vunpack.c.l.b16 %v1798
        %v2301 = vunpack.c.l.b16 %v1800
        %v2302 = vunpack.c.l.b16 %v1801
        %v2303 = vunpack.c.l.b16 %v1803
        %v2304 = vunpack.c.l.b16 %v1804
        %v2305 = vunpack.c.l.b16 %v1806
        %v2306 = vunpack.c.l.b16 %v1807
        %v2307 = vunpack.c.l.b16 %v1809
        %v2308 = vunpack.c.l.b16 %v1810
        %v2309 = vunpack.c.l.b16 %v1812
        %v2310 = vunpack.c.l.b16 %v1813
        %v2311 = vpack.c.b16 %v2296, %v2295
        %v2312 = vpack.c.b16 %v2298, %v2297
        %v2313 = vpack.c.b16 %v2300, %v2299
        %v2314 = vpack.c.b16 %v2302, %v2301
        %v2315 = vpack.c.b16 %v2304, %v2303
        %v2316 = vpack.c.b16 %v2306, %v2305
        %v2317 = vpack.c.b16 %v2308, %v2307
        %v2318 = vpack.c.b16 %v2310, %v2309
        %2319 = vrot.lane.b32.xlu0 %v2311, 64
        %v2320 = vpop.permute.xlu0 %2319
        %2321 = vrot.lane.b32.xlu0 %v2312, 64
        %v2322 = vpop.permute.xlu0 %2321
        %2323 = vrot.lane.b32.xlu0 %v2313, 64
        %v2324 = vpop.permute.xlu0 %2323
        %2325 = vrot.lane.b32.xlu0 %v2314, 64
        %v2326 = vpop.permute.xlu0 %2325
        %2327 = vrot.lane.b32.xlu0 %v2315, 64
        %v2328 = vpop.permute.xlu0 %2327
        %2329 = vrot.lane.b32.xlu0 %v2316, 64
        %v2330 = vpop.permute.xlu0 %2329
        %2331 = vrot.lane.b32.xlu0 %v2317, 64
        %v2332 = vpop.permute.xlu0 %2331
        %2333 = vrot.lane.b32.xlu0 %v2318, 64
        %v2334 = vpop.permute.xlu0 %2333
        %v2335 = vunpack.c.l.b16 %v1828
        %v2336 = vunpack.c.l.b16 %v1838
        %v2337 = vunpack.c.l.b16 %v1852
        %v2338 = vunpack.c.l.b16 %v1862
        %v2339 = vunpack.c.l.b16 %v1876
        %v2340 = vunpack.c.l.b16 %v1886
        %v2341 = vunpack.c.l.b16 %v1900
        %v2342 = vunpack.c.l.b16 %v1910
        %v2343 = vunpack.c.l.b16 %v1924
        %v2344 = vunpack.c.l.b16 %v1934
        %v2345 = vunpack.c.l.b16 %v1948
        %v2346 = vunpack.c.l.b16 %v1958
        %v2347 = vunpack.c.l.b16 %v1972
        %v2348 = vunpack.c.l.b16 %v1982
        %v2349 = vunpack.c.l.b16 %v1996
        %v2350 = vunpack.c.l.b16 %v2006
        %v2351 = vpack.c.b16 %v2336, %v2335
        %v2352 = vpack.c.b16 %v2338, %v2337
        %v2353 = vpack.c.b16 %v2340, %v2339
        %v2354 = vpack.c.b16 %v2342, %v2341
        %v2355 = vpack.c.b16 %v2344, %v2343
        %v2356 = vpack.c.b16 %v2346, %v2345
        %v2357 = vpack.c.b16 %v2348, %v2347
        %v2358 = vpack.c.b16 %v2350, %v2349
        %2359 = vrot.lane.b32.xlu0 %v2351, 96
        %v2360 = vpop.permute.xlu0 %2359
        %2361 = vrot.lane.b32.xlu0 %v2352, 96
        %v2362 = vpop.permute.xlu0 %2361
        %2363 = vrot.lane.b32.xlu0 %v2353, 96
        %v2364 = vpop.permute.xlu0 %2363
        %2365 = vrot.lane.b32.xlu0 %v2354, 96
        %v2366 = vpop.permute.xlu0 %2365
        %2367 = vrot.lane.b32.xlu0 %v2355, 96
        %v2368 = vpop.permute.xlu0 %2367
        %2369 = vrot.lane.b32.xlu0 %v2356, 96
        %v2370 = vpop.permute.xlu0 %2369
        %2371 = vrot.lane.b32.xlu0 %v2357, 96
        %v2372 = vpop.permute.xlu0 %2371
        %2373 = vrot.lane.b32.xlu0 %v2358, 96
        %v2374 = vpop.permute.xlu0 %2373
        %v2375 = vunpack.c.l.b16 %v2034
        %v2376 = vunpack.c.l.b16 %v2037
        %v2377 = vunpack.c.l.b16 %v2041
        %v2378 = vunpack.c.l.b16 %v2044
        %v2379 = vunpack.c.l.b16 %v2048
        %v2380 = vunpack.c.l.b16 %v2051
        %v2381 = vunpack.c.l.b16 %v2055
        %v2382 = vunpack.c.l.b16 %v2058
        %v2383 = vunpack.c.l.b16 %v2062
        %v2384 = vunpack.c.l.b16 %v2065
        %v2385 = vunpack.c.l.b16 %v2069
        %v2386 = vunpack.c.l.b16 %v2072
        %v2387 = vunpack.c.l.b16 %v2076
        %v2388 = vunpack.c.l.b16 %v2079
        %v2389 = vunpack.c.l.b16 %v2083
        %v2390 = vunpack.c.l.b16 %v2086
        %v2391 = vpack.c.b16 %v2376, %v2375
        %v2392 = vpack.c.b16 %v2378, %v2377
        %v2393 = vpack.c.b16 %v2380, %v2379
        %v2394 = vpack.c.b16 %v2382, %v2381
        %v2395 = vpack.c.b16 %v2384, %v2383
        %v2396 = vpack.c.b16 %v2386, %v2385
        %v2397 = vpack.c.b16 %v2388, %v2387
        %v2398 = vpack.c.b16 %v2390, %v2389
        %vm2399 = vcmask 261120
        %v2402 = vsel %vm2399, %v2103, %v2136
        %v2405 = vsel %vm2399, %v2104, %v2138
        %v2408 = vsel %vm2399, %v2105, %v2140
        %v2411 = vsel %vm2399, %v2106, %v2142
        %v2414 = vsel %vm2399, %v2107, %v2144
        %v2417 = vsel %vm2399, %v2108, %v2146
        %v2420 = vsel %vm2399, %v2109, %v2148
        %v2423 = vsel %vm2399, %v2110, %v2150
        %vm2424 = vcmask 523264
        %v2426 = vsel %vm2424, %v2402, %v2176
        %v2428 = vsel %vm2424, %v2405, %v2178
        %v2430 = vsel %vm2424, %v2408, %v2180
        %v2432 = vsel %vm2424, %v2411, %v2182
        %v2434 = vsel %vm2424, %v2414, %v2184
        %v2436 = vsel %vm2424, %v2417, %v2186
        %v2438 = vsel %vm2424, %v2420, %v2188
        %v2440 = vsel %vm2424, %v2423, %v2190
        %vm2441 = vcmask 785408
        %v2443 = vsel %vm2441, %v2426, %v2216
        %v2446 = vsel %vm2441, %v2428, %v2218
        %v2449 = vsel %vm2441, %v2430, %v2220
        %v2452 = vsel %vm2441, %v2432, %v2222
        %v2455 = vsel %vm2441, %v2434, %v2224
        %v2458 = vsel %vm2441, %v2436, %v2226
        %v2461 = vsel %vm2441, %v2438, %v2228
        %v2464 = vsel %vm2441, %v2440, %v2230
        %v2468 = vsel %vm2399, %v2247, %v2280
        %v2471 = vsel %vm2399, %v2248, %v2282
        %v2474 = vsel %vm2399, %v2249, %v2284
        %v2477 = vsel %vm2399, %v2250, %v2286
        %v2480 = vsel %vm2399, %v2251, %v2288
        %v2483 = vsel %vm2399, %v2252, %v2290
        %v2486 = vsel %vm2399, %v2253, %v2292
        %v2489 = vsel %vm2399, %v2254, %v2294
        %v2491 = vsel %vm2424, %v2468, %v2320
        %v2493 = vsel %vm2424, %v2471, %v2322
        %v2495 = vsel %vm2424, %v2474, %v2324
        %v2497 = vsel %vm2424, %v2477, %v2326
        %v2499 = vsel %vm2424, %v2480, %v2328
        %v2501 = vsel %vm2424, %v2483, %v2330
        %v2503 = vsel %vm2424, %v2486, %v2332
        %v2505 = vsel %vm2424, %v2489, %v2334
        %v2507 = vsel %vm2441, %v2491, %v2360
        %v2510 = vsel %vm2441, %v2493, %v2362
        %v2513 = vsel %vm2441, %v2495, %v2364
        %v2516 = vsel %vm2441, %v2497, %v2366
        %v2519 = vsel %vm2441, %v2499, %v2368
        %v2522 = vsel %vm2441, %v2501, %v2370
        %v2525 = vsel %vm2441, %v2503, %v2372
        %v2528 = vsel %vm2441, %v2505, %v2374
        %v2530 = vld [vmem:[%s2] sm:$0xf]
        %v2531 = vld [vmem:[%s2 + $0x4] sm:$0xf]
        %v2532 = vld [vmem:[%s2 + $0x8] sm:$0xf]
        %v2533 = vld [vmem:[%s2 + $0xc] sm:$0xf]
        %v2534 = vld [vmem:[%s2 + $0x10] sm:$0xf]
        %v2535 = vld [vmem:[%s2 + $0x14] sm:$0xf]
        %v2536 = vld [vmem:[%s2 + $0x18] sm:$0xf]
        %v2537 = vld [vmem:[%s2 + $0x1c] sm:$0xf]
        %v2538 = vld [vmem:[%s2 + $0x20] sm:$0xf]
        %v2539 = vld [vmem:[%s2 + $0x24] sm:$0xf]
        %v2540 = vld [vmem:[%s2 + $0x28] sm:$0xf]
        %v2541 = vld [vmem:[%s2 + $0x2c] sm:$0xf]
        %v2542 = vld [vmem:[%s2 + $0x30] sm:$0xf]
        %v2543 = vld [vmem:[%s2 + $0x34] sm:$0xf]
        %v2544 = vld [vmem:[%s2 + $0x38] sm:$0xf]
        %v2545 = vld [vmem:[%s2 + $0x3c] sm:$0xf]
        %v2546 = vld [vmem:[%s2 + $0x40] sm:$0xf]
        %v2547 = vld [vmem:[%s2 + $0x44] sm:$0xf]
        %v2548 = vld [vmem:[%s2 + $0x48] sm:$0xf]
        %v2549 = vld [vmem:[%s2 + $0x4c] sm:$0xf]
        %v2550 = vld [vmem:[%s2 + $0x50] sm:$0xf]
        %v2551 = vld [vmem:[%s2 + $0x54] sm:$0xf]
        %v2552 = vld [vmem:[%s2 + $0x58] sm:$0xf]
        %v2553 = vld [vmem:[%s2 + $0x5c] sm:$0xf]
        %v2554 = vld [vmem:[%s2 + $0x60] sm:$0xf]
        %v2555 = vld [vmem:[%s2 + $0x64] sm:$0xf]
        %v2556 = vld [vmem:[%s2 + $0x68] sm:$0xf]
        %v2557 = vld [vmem:[%s2 + $0x6c] sm:$0xf]
        %v2558 = vld [vmem:[%s2 + $0x70] sm:$0xf]
        %v2559 = vld [vmem:[%s2 + $0x74] sm:$0xf]
        %v2560 = vld [vmem:[%s2 + $0x78] sm:$0xf]
        %v2561 = vld [vmem:[%s2 + $0x7c] sm:$0xf]
        %v2562 = vld [vmem:[%s2 + $0x80] sm:$0xf]
        %v2563 = vld [vmem:[%s2 + $0x84] sm:$0xf]
        %v2564 = vld [vmem:[%s2 + $0x88] sm:$0xf]
        %v2565 = vld [vmem:[%s2 + $0x8c] sm:$0xf]
        %v2566 = vld [vmem:[%s5] sm:$0x1]
        %v2568 = vperm.slane %v2566, 0
        %v2606 = vunpack.c.l.b16 %v2530
        %v2607 = vunpack.c.l.b16 %v2531
        %v2608 = vunpack.c.l.b16 %v2532
        %v2609 = vunpack.c.l.b16 %v2533
        %v2610 = vunpack.c.l.b16 %v2534
        %v2611 = vunpack.c.l.b16 %v2535
        %v2612 = vunpack.c.l.b16 %v2536
        %v2613 = vunpack.c.l.b16 %v2537
        %v2614 = vunpack.c.l.b16 %v2538
        %v2615 = vunpack.c.l.b16 %v2539
        %v2616 = vunpack.c.l.b16 %v2540
        %v2617 = vunpack.c.l.b16 %v2541
        %v2618 = vunpack.c.l.b16 %v2542
        %v2619 = vunpack.c.l.b16 %v2543
        %v2620 = vunpack.c.l.b16 %v2544
        %v2621 = vunpack.c.l.b16 %v2545
        %v2622 = vunpack.c.l.b16 %v2546
        %v2623 = vunpack.c.l.b16 %v2547
        %v2624 = vunpack.c.l.b16 %v2548
        %v2625 = vunpack.c.l.b16 %v2549
        %v2626 = vunpack.c.l.b16 %v2550
        %v2627 = vunpack.c.l.b16 %v2551
        %v2628 = vunpack.c.l.b16 %v2552
        %v2629 = vunpack.c.l.b16 %v2553
        %v2630 = vunpack.c.l.b16 %v2554
        %v2631 = vunpack.c.l.b16 %v2555
        %v2632 = vunpack.c.l.b16 %v2556
        %v2633 = vunpack.c.l.b16 %v2557
        %v2634 = vunpack.c.l.b16 %v2558
        %v2635 = vunpack.c.l.b16 %v2559
        %v2636 = vunpack.c.l.b16 %v2560
        %v2637 = vunpack.c.l.b16 %v2561
        %v2638 = vunpack.c.l.b16 %v2562
        %v2639 = vunpack.c.l.b16 %v2563
        %v2640 = vunpack.c.l.b16 %v2564
        %v2641 = vunpack.c.l.b16 %v2565
        %v2642 = vpack.c.b16 %v2607, %v2606
        %v2643 = vpack.c.b16 %v2609, %v2608
        %v2644 = vpack.c.b16 %v2611, %v2610
        %v2645 = vpack.c.b16 %v2613, %v2612
        %v2646 = vpack.c.b16 %v2615, %v2614
        %v2647 = vpack.c.b16 %v2617, %v2616
        %v2648 = vpack.c.b16 %v2619, %v2618
        %v2649 = vpack.c.b16 %v2621, %v2620
        %v2650 = vpack.c.b16 %v2623, %v2622
        %v2651 = vpack.c.b16 %v2625, %v2624
        %v2652 = vpack.c.b16 %v2627, %v2626
        %v2653 = vpack.c.b16 %v2629, %v2628
        %v2654 = vpack.c.b16 %v2631, %v2630
        %v2655 = vpack.c.b16 %v2633, %v2632
        %v2656 = vpack.c.b16 %v2635, %v2634
        %v2657 = vpack.c.b16 %v2637, %v2636
        %v2658 = vpack.c.b16 %v2639, %v2638
        %v2659 = vpack.c.b16 %v2641, %v2640
        %v2679 = vsel %vm2399, %v2391, 0
        %v2682 = vsel %vm2399, %v2392, 0
        %v2685 = vsel %vm2399, %v2393, 0
        %v2688 = vsel %vm2399, %v2394, 0
        %v2691 = vsel %vm2399, %v2395, 0
        %v2694 = vsel %vm2399, %v2396, 0
        %v2697 = vsel %vm2399, %v2397, 0
        %v2700 = vsel %vm2399, %v2398, 0
        %2702 = vmatpush.bf16.msra.mxu0 %v2649
        %2703 = vmatpush.bf16.msra.mxu0 %v2648
        %2704 = vmatpush.bf16.msra.mxu0 %v2647
        %2705 = vmatpush.bf16.msra.mxu0 %v2646
        %2706 = vmatpush.bf16.msra.mxu0 %v2645
        %2707 = vmatpush.bf16.msra.mxu0 %v2644
        %2708 = vmatpush.bf16.msra.mxu0 %v2643
        %2709 = vmatpush.bf16.msra.mxu0 %v2642
        %2710 = vmatmul.bf16.gmra.mxu0 %v2443
        %v2711 = vpop.f32.mrf.mxu0
        %v2712 = vadd.f32 %v2568, %v2711
        %v2713 = vpop.f32.mrf.mxu0
        %v2714 = vadd.f32 %v2568, %v2713
        %2715 = vmatmul.bf16.gmra.mxu0 %v2446
        %v2716 = vpop.f32.mrf.mxu0
        %v2717 = vadd.f32 %v2568, %v2716
        %v2718 = vpop.f32.mrf.mxu0
        %v2719 = vadd.f32 %v2568, %v2718
        %2720 = vmatmul.bf16.gmra.mxu0 %v2449
        %v2721 = vpop.f32.mrf.mxu0
        %v2722 = vadd.f32 %v2568, %v2721
        %v2723 = vpop.f32.mrf.mxu0
        %v2724 = vadd.f32 %v2568, %v2723
        %2725 = vmatmul.bf16.gmra.mxu0 %v2452
        %v2726 = vpop.f32.mrf.mxu0
        %v2727 = vadd.f32 %v2568, %v2726
        %v2728 = vpop.f32.mrf.mxu0
        %v2729 = vadd.f32 %v2568, %v2728
        %2730 = vmatmul.bf16.gmra.mxu0 %v2455
        %v2731 = vpop.f32.mrf.mxu0
        %v2732 = vadd.f32 %v2568, %v2731
        %v2733 = vpop.f32.mrf.mxu0
        %v2734 = vadd.f32 %v2568, %v2733
        %2735 = vmatmul.bf16.gmra.mxu0 %v2458
        %v2736 = vpop.f32.mrf.mxu0
        %v2737 = vadd.f32 %v2568, %v2736
        %v2738 = vpop.f32.mrf.mxu0
        %v2739 = vadd.f32 %v2568, %v2738
        %2740 = vmatmul.bf16.gmra.mxu0 %v2461
        %v2741 = vpop.f32.mrf.mxu0
        %v2742 = vadd.f32 %v2568, %v2741
        %v2743 = vpop.f32.mrf.mxu0
        %v2744 = vadd.f32 %v2568, %v2743
        %2745 = vmatmul.bf16.gmra.mxu0 %v2464
        %v2746 = vpop.f32.mrf.mxu0
        %v2747 = vadd.f32 %v2568, %v2746
        %v2748 = vpop.f32.mrf.mxu0
        %v2749 = vadd.f32 %v2568, %v2748
        %2750 = vdwg.mxu0
        %2751 = vmatpush.bf16.msra.mxu0 %v2657
        %2752 = vmatpush.bf16.msra.mxu0 %v2656
        %2753 = vmatpush.bf16.msra.mxu0 %v2655
        %2754 = vmatpush.bf16.msra.mxu0 %v2654
        %2755 = vmatpush.bf16.msra.mxu0 %v2653
        %2756 = vmatpush.bf16.msra.mxu0 %v2652
        %2757 = vmatpush.bf16.msra.mxu0 %v2651
        %2758 = vmatpush.bf16.msra.mxu0 %v2650
        %2759 = vmatmul.bf16.gmra.mxu0 %v2507
        %v2760 = vpop.f32.mrf.mxu0
        %v2761 = vadd.f32 %v2712, %v2760
        %v2762 = vpop.f32.mrf.mxu0
        %v2763 = vadd.f32 %v2714, %v2762
        %2764 = vmatmul.bf16.gmra.mxu0 %v2510
        %v2765 = vpop.f32.mrf.mxu0
        %v2766 = vadd.f32 %v2717, %v2765
        %v2767 = vpop.f32.mrf.mxu0
        %v2768 = vadd.f32 %v2719, %v2767
        %2769 = vmatmul.bf16.gmra.mxu0 %v2513
        %v2770 = vpop.f32.mrf.mxu0
        %v2771 = vadd.f32 %v2722, %v2770
        %v2772 = vpop.f32.mrf.mxu0
        %v2773 = vadd.f32 %v2724, %v2772
        %2774 = vmatmul.bf16.gmra.mxu0 %v2516
        %v2775 = vpop.f32.mrf.mxu0
        %v2776 = vadd.f32 %v2727, %v2775
        %v2777 = vpop.f32.mrf.mxu0
        %v2778 = vadd.f32 %v2729, %v2777
        %2779 = vmatmul.bf16.gmra.mxu0 %v2519
        %v2780 = vpop.f32.mrf.mxu0
        %v2781 = vadd.f32 %v2732, %v2780
        %v2782 = vpop.f32.mrf.mxu0
        %v2783 = vadd.f32 %v2734, %v2782
        %2784 = vmatmul.bf16.gmra.mxu0 %v2522
        %v2785 = vpop.f32.mrf.mxu0
        %v2786 = vadd.f32 %v2737, %v2785
        %v2787 = vpop.f32.mrf.mxu0
        %v2788 = vadd.f32 %v2739, %v2787
        %2789 = vmatmul.bf16.gmra.mxu0 %v2525
        %v2790 = vpop.f32.mrf.mxu0
        %v2791 = vadd.f32 %v2742, %v2790
        %v2792 = vpop.f32.mrf.mxu0
        %v2793 = vadd.f32 %v2744, %v2792
        %2794 = vmatmul.bf16.gmra.mxu0 %v2528
        %v2795 = vpop.f32.mrf.mxu0
        %v2796 = vadd.f32 %v2747, %v2795
        %v2797 = vpop.f32.mrf.mxu0
        %v2798 = vadd.f32 %v2749, %v2797
        %2799 = vdwg.mxu0
        %2800 = vmatpush.bf16.msra.mxu0 0
        %2801 = vmatpush.bf16.msra.mxu0 0
        %2802 = vmatpush.bf16.msra.mxu0 0
        %2803 = vmatpush.bf16.msra.mxu0 0
        %2804 = vmatpush.bf16.msra.mxu0 0
        %2805 = vmatpush.bf16.msra.mxu0 0
        %2806 = vmatpush.bf16.msra.mxu0 %v2659
        %2807 = vmatpush.bf16.msra.mxu0 %v2658
        %2808 = vmatmul.bf16.gmra.mxu0 %v2679
        %v2809 = vpop.f32.mrf.mxu0
        %v2810 = vadd.f32 %v2761, %v2809
        %v2811 = vpop.f32.mrf.mxu0
        %v2812 = vadd.f32 %v2763, %v2811
        %2813 = vmatmul.bf16.gmra.mxu0 %v2682
        %v2814 = vpop.f32.mrf.mxu0
        %v2815 = vadd.f32 %v2766, %v2814
        %v2816 = vpop.f32.mrf.mxu0
        %v2817 = vadd.f32 %v2768, %v2816
        %2818 = vmatmul.bf16.gmra.mxu0 %v2685
        %v2819 = vpop.f32.mrf.mxu0
        %v2820 = vadd.f32 %v2771, %v2819
        %v2821 = vpop.f32.mrf.mxu0
        %v2822 = vadd.f32 %v2773, %v2821
        %2823 = vmatmul.bf16.gmra.mxu0 %v2688
        %v2824 = vpop.f32.mrf.mxu0
        %v2825 = vadd.f32 %v2776, %v2824
        %v2826 = vpop.f32.mrf.mxu0
        %v2827 = vadd.f32 %v2778, %v2826
        %2828 = vmatmul.bf16.gmra.mxu0 %v2691
        %v2829 = vpop.f32.mrf.mxu0
        %v2830 = vadd.f32 %v2781, %v2829
        %v2831 = vpop.f32.mrf.mxu0
        %v2832 = vadd.f32 %v2783, %v2831
        %2833 = vmatmul.bf16.gmra.mxu0 %v2694
        %v2834 = vpop.f32.mrf.mxu0
        %v2835 = vadd.f32 %v2786, %v2834
        %v2836 = vpop.f32.mrf.mxu0
        %v2837 = vadd.f32 %v2788, %v2836
        %2838 = vmatmul.bf16.gmra.mxu0 %v2697
        %v2839 = vpop.f32.mrf.mxu0
        %v2840 = vadd.f32 %v2791, %v2839
        %v2841 = vpop.f32.mrf.mxu0
        %v2842 = vadd.f32 %v2793, %v2841
        %2843 = vmatmul.bf16.gmra.mxu0 %v2700
        %v2844 = vpop.f32.mrf.mxu0
        %v2845 = vadd.f32 %v2796, %v2844
        %v2846 = vpop.f32.mrf.mxu0
        %v2847 = vadd.f32 %v2798, %v2846
        %2848 = vdwg.mxu0
        %v2849 = vmax.f32 %v2810, 0.0
        %v2850 = vmax.f32 %v2812, 0.0
        %v2851 = vmax.f32 %v2815, 0.0
        %v2852 = vmax.f32 %v2817, 0.0
        %v2853 = vmax.f32 %v2820, 0.0
        %v2854 = vmax.f32 %v2822, 0.0
        %v2855 = vmax.f32 %v2825, 0.0
        %v2856 = vmax.f32 %v2827, 0.0
        %v2857 = vmax.f32 %v2830, 0.0
        %v2858 = vmax.f32 %v2832, 0.0
        %v2859 = vmax.f32 %v2835, 0.0
        %v2860 = vmax.f32 %v2837, 0.0
        %v2861 = vmax.f32 %v2840, 0.0
        %v2862 = vmax.f32 %v2842, 0.0
        %v2863 = vmax.f32 %v2845, 0.0
        %v2864 = vmax.f32 %v2847, 0.0
        %v2865 = vpack.c.bf16 %v2850, %v2849
        %v2866 = vpack.c.bf16 %v2852, %v2851
        %v2867 = vpack.c.bf16 %v2854, %v2853
        %v2868 = vpack.c.bf16 %v2856, %v2855
        %v2869 = vpack.c.bf16 %v2858, %v2857
        %v2870 = vpack.c.bf16 %v2860, %v2859
        %v2871 = vpack.c.bf16 %v2862, %v2861
        %v2872 = vpack.c.bf16 %v2864, %v2863
        %v2873 = vld [vmem:[%s3] sm:$0xf]
        %v2874 = vld [vmem:[%s3 + $0x4] sm:$0xf]
        %v2875 = vld [vmem:[%s3 + $0x8] sm:$0xf]
        %v2876 = vld [vmem:[%s3 + $0xc] sm:$0xf]
        %s2877 = smul.u32 %s1181, 2
        %s2878 = smul.addr %s2877, 4
        %s2879 = scalar_lea.vmem %s281, %s2878 [#allocation3]
        %v2880 = vld [vmem:[%s2879] sm:$0xf]
        %v2881 = vld [vmem:[%s2879 + $0x4] sm:$0xf]
        %v2882 = vld [vmem:[%s2879 + $0x8] sm:$0xf]
        %v2883 = vld [vmem:[%s2879 + $0xc] sm:$0xf]
        %v2884 = vld [vmem:[%s2879 + $0x10] sm:$0xf]
        %v2885 = vld [vmem:[%s2879 + $0x14] sm:$0xf]
        %v2886 = vld [vmem:[%s2879 + $0x18] sm:$0xf]
        %v2887 = vld [vmem:[%s2879 + $0x1c] sm:$0xf]
        %v2888 = vld [vmem:[%s2879 + $0x20] sm:$0xf]
        %v2889 = vld [vmem:[%s2879 + $0x24] sm:$0xf]
        %v2890 = vld [vmem:[%s2879 + $0x28] sm:$0xf]
        %v2891 = vld [vmem:[%s2879 + $0x2c] sm:$0xf]
        %v2892 = vld [vmem:[%s2879 + $0x30] sm:$0xf]
        %v2893 = vld [vmem:[%s2879 + $0x34] sm:$0xf]
        %v2894 = vld [vmem:[%s2879 + $0x38] sm:$0xf]
        %v2895 = vld [vmem:[%s2879 + $0x3c] sm:$0xf]
        %v2896 = vunpack.c.l.bf16 %v2880
        %v2897 = vunpack.c.l.bf16 %v2881
        %v2898 = vunpack.c.l.bf16 %v2882
        %v2899 = vunpack.c.l.bf16 %v2883
        %v2900 = vunpack.c.l.bf16 %v2884
        %v2901 = vunpack.c.l.bf16 %v2885
        %v2902 = vunpack.c.l.bf16 %v2886
        %v2903 = vunpack.c.l.bf16 %v2887
        %v2904 = vunpack.c.l.bf16 %v2888
        %v2905 = vunpack.c.l.bf16 %v2889
        %v2906 = vunpack.c.l.bf16 %v2890
        %v2907 = vunpack.c.l.bf16 %v2891
        %v2908 = vunpack.c.l.bf16 %v2892
        %v2909 = vunpack.c.l.bf16 %v2893
        %v2910 = vunpack.c.l.bf16 %v2894
        %v2911 = vunpack.c.l.bf16 %v2895
        %v2912 = vld [vmem:[%s6] sm:$0x1]
        %v2914 = vperm.slane %v2912, 0
        %v2920 = vunpack.c.l.b16 %v2873
        %v2921 = vunpack.c.l.b16 %v2874
        %v2922 = vunpack.c.l.b16 %v2875
        %v2923 = vunpack.c.l.b16 %v2876
        %v2924 = vpack.c.b16 %v2921, %v2920
        %v2925 = vpack.c.b16 %v2923, %v2922
        %v2929 = vsel %vm2399, %v2865, 0
        %v2932 = vsel %vm2399, %v2866, 0
        %v2935 = vsel %vm2399, %v2867, 0
        %v2938 = vsel %vm2399, %v2868, 0
        %v2941 = vsel %vm2399, %v2869, 0
        %v2944 = vsel %vm2399, %v2870, 0
        %v2947 = vsel %vm2399, %v2871, 0
        %v2950 = vsel %vm2399, %v2872, 0
        %2952 = vmatpush.bf16.msra.mxu0 0
        %2953 = vmatpush.bf16.msra.mxu0 0
        %2954 = vmatpush.bf16.msra.mxu0 0
        %2955 = vmatpush.bf16.msra.mxu0 0
        %2956 = vmatpush.bf16.msra.mxu0 0
        %2957 = vmatpush.bf16.msra.mxu0 0
        %2958 = vmatpush.bf16.msra.mxu0 %v2925
        %2959 = vmatpush.bf16.msra.mxu0 %v2924
        %2960 = vmatmul.bf16.gmra.mxu0 %v2929
        %v2961 = vpop.f32.mrf.mxu0
        %v2962 = vadd.f32 %v2914, %v2961
        %v2963 = vpop.f32.mrf.mxu0
        %v2964 = vadd.f32 %v2914, %v2963
        %2965 = vmatmul.bf16.gmra.mxu0 %v2932
        %v2966 = vpop.f32.mrf.mxu0
        %v2967 = vadd.f32 %v2914, %v2966
        %v2968 = vpop.f32.mrf.mxu0
        %v2969 = vadd.f32 %v2914, %v2968
        %2970 = vmatmul.bf16.gmra.mxu0 %v2935
        %v2971 = vpop.f32.mrf.mxu0
        %v2972 = vadd.f32 %v2914, %v2971
        %v2973 = vpop.f32.mrf.mxu0
        %v2974 = vadd.f32 %v2914, %v2973
        %2975 = vmatmul.bf16.gmra.mxu0 %v2938
        %v2976 = vpop.f32.mrf.mxu0
        %v2977 = vadd.f32 %v2914, %v2976
        %v2978 = vpop.f32.mrf.mxu0
        %v2979 = vadd.f32 %v2914, %v2978
        %2980 = vmatmul.bf16.gmra.mxu0 %v2941
        %v2981 = vpop.f32.mrf.mxu0
        %v2982 = vadd.f32 %v2914, %v2981
        %v2983 = vpop.f32.mrf.mxu0
        %v2984 = vadd.f32 %v2914, %v2983
        %2985 = vmatmul.bf16.gmra.mxu0 %v2944
        %v2986 = vpop.f32.mrf.mxu0
        %v2987 = vadd.f32 %v2914, %v2986
        %v2988 = vpop.f32.mrf.mxu0
        %v2989 = vadd.f32 %v2914, %v2988
        %2990 = vmatmul.bf16.gmra.mxu0 %v2947
        %v2991 = vpop.f32.mrf.mxu0
        %v2992 = vadd.f32 %v2914, %v2991
        %v2993 = vpop.f32.mrf.mxu0
        %v2994 = vadd.f32 %v2914, %v2993
        %2995 = vmatmul.bf16.gmra.mxu0 %v2950
        %v2996 = vpop.f32.mrf.mxu0
        %v2997 = vadd.f32 %v2914, %v2996
        %v2998 = vpop.f32.mrf.mxu0
        %v2999 = vadd.f32 %v2914, %v2998
        %3000 = vdwg.mxu0
        %v3001 = vadd.f32 %v2962, %v2896
        %v3002 = vadd.f32 %v2964, %v2897
        %v3003 = vadd.f32 %v2967, %v2898
        %v3004 = vadd.f32 %v2969, %v2899
        %v3005 = vadd.f32 %v2972, %v2900
        %v3006 = vadd.f32 %v2974, %v2901
        %v3007 = vadd.f32 %v2977, %v2902
        %v3008 = vadd.f32 %v2979, %v2903
        %v3009 = vadd.f32 %v2982, %v2904
        %v3010 = vadd.f32 %v2984, %v2905
        %v3011 = vadd.f32 %v2987, %v2906
        %v3012 = vadd.f32 %v2989, %v2907
        %v3013 = vadd.f32 %v2992, %v2908
        %v3014 = vadd.f32 %v2994, %v2909
        %v3015 = vadd.f32 %v2997, %v2910
        %v3016 = vadd.f32 %v2999, %v2911
        %v3017 = vmax.f32 %v3001, 0.0
        %v3018 = vmax.f32 %v3002, 0.0
        %v3019 = vmax.f32 %v3003, 0.0
        %v3020 = vmax.f32 %v3004, 0.0
        %v3021 = vmax.f32 %v3005, 0.0
        %v3022 = vmax.f32 %v3006, 0.0
        %v3023 = vmax.f32 %v3007, 0.0
        %v3024 = vmax.f32 %v3008, 0.0
        %v3025 = vmax.f32 %v3009, 0.0
        %v3026 = vmax.f32 %v3010, 0.0
        %v3027 = vmax.f32 %v3011, 0.0
        %v3028 = vmax.f32 %v3012, 0.0
        %v3029 = vmax.f32 %v3013, 0.0
        %v3030 = vmax.f32 %v3014, 0.0
        %v3031 = vmax.f32 %v3015, 0.0
        %v3032 = vmax.f32 %v3016, 0.0
        %3033 = vst [vmem:[%s312] sm:$0xff] %v3017
        %3034 = vst [vmem:[%s312 + $0x8] sm:$0xff] %v3018
        %3035 = vst [vmem:[%s312 + $0x10] sm:$0xff] %v3019
        %3036 = vst [vmem:[%s312 + $0x18] sm:$0xff] %v3020
        %3037 = vst [vmem:[%s312 + $0x20] sm:$0xff] %v3021
        %3038 = vst [vmem:[%s312 + $0x28] sm:$0xff] %v3022
        %3039 = vst [vmem:[%s312 + $0x30] sm:$0xff] %v3023
        %3040 = vst [vmem:[%s312 + $0x38] sm:$0xff] %v3024
        %3041 = vst [vmem:[%s312 + $0x40] sm:$0xff] %v3025
        %3042 = vst [vmem:[%s312 + $0x48] sm:$0xff] %v3026
        %3043 = vst [vmem:[%s312 + $0x50] sm:$0xff] %v3027
        %3044 = vst [vmem:[%s312 + $0x58] sm:$0xff] %v3028
        %3045 = vst [vmem:[%s312 + $0x60] sm:$0xff] %v3029
        %3046 = vst [vmem:[%s312 + $0x68] sm:$0xff] %v3030
        %3047 = vst [vmem:[%s312 + $0x70] sm:$0xff] %v3031
        %3048 = vst [vmem:[%s312 + $0x78] sm:$0xff] %v3032
        %s3049 = sand.u32 %s198, 1
        %s3050 = scalar_lea.sflag [#allocation5], %s3049
        %s3051 = sand.u32 %s198, 1
        %s3052 = smul.addr %s3051, 128
        %s3053 = scalar_lea.vmem [#allocation6], %s3052
        // Predicated region
        $region57: #{tpu_custom_call.1} parent=47 // pred_check
          %p3054 = pneg %p208
        $region58: #{tpu_custom_call.1} parent=47 // pred_check_branch
          %3056 = sbr.rel (%p3054) target = $region60
        $region59: #{tpu_custom_call.1} parent=47 // pred_region
          %s3057 = smul.u32 8, %s29
          %3059 = vsyncadd %s3050, 0
          %s3060 = smul.addr %s3057, 2
          %s3061 = smul.addr %s28, 32
          %s3062 = sadd.s32 %s3060, %s3061
          %s3063 = smul.addr %s3062, 8
          %s3064 = scalar_lea.hbm %s7, %s3063
          %s3065 = sshll.u32 %s3053, 4
          %s3066 = int_to_ptr.vmem [resolvable:$true] %s3065
          %s3067 = sshll.u32 %s3064, 4
          %s3068 = int_to_ptr.hbm [resolvable:$true] %s3067
          %3073 = dma.vmem_to_hbm [thread:$0]  %s3066, 2048, %s3068, %s3050, 128, 128, 8
        $region60: #{tpu_custom_call.1} parent=47 // pred_fallthru
          _
      $region48: #{tpu_custom_call.1} parent=5 // pred_fallthru
        _
      %p3074 = scmp.le.s32.totalorder 2, %s19
      // Predicated region
      $region61: #{tpu_custom_call.1} parent=5 // pred_check
        %p3075 = pneg %p3074
      $region62: #{tpu_custom_call.1} parent=5 // pred_check_branch
        %3077 = sbr.rel (%p3075) target = $region64
      $region63: #{tpu_custom_call.1} parent=5 // pred_region
        %s3078 = ssub.s32 %s19, 2
        // Predicated region
        $region65: #{tpu_custom_call.1} parent=63 // pred_check
          %p3079 = pneg %p214
        $region66: #{tpu_custom_call.1} parent=63 // pred_check_branch
          %3081 = sbr.rel (%p3079) target = $region68
        $region67: #{tpu_custom_call.1} parent=63 // pred_region
          %s3082 = sand.u32 %s199, 1
          %s3083 = scalar_lea.sflag [#allocation5], %s3082
          %s3084 = sand.u32 %s199, 1
          %s3085 = smul.addr %s3084, 128
          %s3086 = scalar_lea.vmem [#allocation6], %s3085
          %3088 = dma.done %s3083, 2048
        $region68: #{tpu_custom_call.1} parent=63 // pred_fallthru
          _
      $region64: #{tpu_custom_call.1} parent=5 // pred_fallthru
        _
    $region6: #{tpu_custom_call.1} parent=1 // loop_footer
      %s23 = sadd.s32 1, %s19
    $region7: #{tpu_custom_call.1} parent=1 // loop_footer_branch
      %18 = sbr.rel target = $region3
    $region8: #{tpu_custom_call.1} parent=1 // loop_exit
      _
    %3089 = vsyncpa [#allocation4], 1
    %s3090 = scalar_lea.sflag [#allocation4], 1
    %3091 = vsyncpa %s3090, 1
    %3092 = vsyncpa [#allocation5], 1
    %s3093 = scalar_lea.sflag [#allocation5], 1
    %3094 = vsyncpa %s3093, 1

</llo_original>
